<compile_context>
chip_gen: v6e
topology: v6e:2x2x1
jax: 0.10.0
libtpu: 0.0.40
codegen_flags: <defaults>
</compile_context>

<pallas_src>
import functools

import jax
import jax.numpy as jnp
from jax import lax
from jax.experimental import pallas as pl
from jax.experimental.pallas import tpu as pltpu


def _unet2d_block_kernel(x_ref, rc_ref, w1_ref, b1_ref, g1_ref, bt1_ref,
                         w2_ref, b2_ref, g2_ref, bt2_ref, o_ref,
                         patch1_ref, patch2_ref, *, ks, pd, h, w, eps):
    """Fused [Conv2d -> ReLU -> GroupNorm(1)] x 2 for one batch sample.

    x_ref:      (1, Cin, H*W)      channels on sublanes, pixels on lanes
    rc_ref:     (2, H*W) int32     row / col index of each flattened pixel
    w*_ref:     (Cout, ks*ks*C)    conv weight as a matmul operand
    b*/g*/bt*:  (Cout, 1)          conv bias / GN gamma / GN beta
    o_ref:      (1, Cout, H*W)
    patch*_ref: (ks*ks*C, H*W)     VMEM im2col scratch
    """
    n_pix = h * w
    rc = rc_ref[...]
    row = rc[0:1, :]                       # (1, H*W)
    col = rc[1:2, :]

    def im2col(x_cn, patch_ref):
        # Zero-padded 'same' conv patches: for tap (kh, kw) shift the
        # flattened image by dh*W + dw lanes and zero reads that fall outside
        # the image, then write the (C, H*W) slab into the patch matrix.
        c = x_cn.shape[0]
        for kh in range(ks):
            for kw in range(ks):
                dh, dw = kh - pd, kw - pd
                s = dh * w + dw
                shifted = x_cn if s == 0 else pltpu.roll(
                    x_cn, shift=(-s) % n_pix, axis=1)
                conds = []
                if dh < 0:
                    conds.append(row >= -dh)
                if dh > 0:
                    conds.append(row < h - dh)
                if dw < 0:
                    conds.append(col >= -dw)
                if dw > 0:
                    conds.append(col < w - dw)
                if conds:
                    m = conds[0]
                    for cnd in conds[1:]:
                        m = jnp.logical_and(m, cnd)
                    shifted = shifted * m.astype(shifted.dtype)
                r0 = (kh * ks + kw) * c
                patch_ref[r0:r0 + c, :] = shifted
        return patch_ref[...]

    def relu_groupnorm(acc, gamma, beta):
        # ReLU + GroupNorm(num_groups=1): stats over the whole (C, H*W)
        # sample, one-pass sum / sum-of-squares, then per-channel affine.
        y = jnp.maximum(acc, 0.0)
        inv_n = 1.0 / y.size
        mean = jnp.sum(y) * inv_n
        var = jnp.sum(y * y) * inv_n - mean * mean
        return (y - mean) * lax.rsqrt(var + eps) * gamma + beta

    # ---- stage 1: Conv(in_c -> out_c) + ReLU + GroupNorm ----
    p1 = im2col(x_ref[0], patch1_ref)                        # (ks*ks*Cin, HW)
    acc1 = jnp.dot(w1_ref[...], p1,
                   preferred_element_type=jnp.float32) + b1_ref[...]
    y1 = relu_groupnorm(acc1, g1_ref[...], bt1_ref[...])     # (Cout, HW) f32

    # ---- stage 2: Conv(out_c -> out_c) + ReLU + GroupNorm (stays in VMEM) --
    p2 = im2col(y1, patch2_ref)                              # (ks*ks*Cout, HW)
    acc2 = jnp.dot(w2_ref[...], p2,
                   preferred_element_type=jnp.float32) + b2_ref[...]
    y2 = relu_groupnorm(acc2, g2_ref[...], bt2_ref[...])

    o_ref[0] = y2.astype(o_ref.dtype)


def unet2d_block(x_nchw, params, *, ks, pd, eps=1e-5):
    """Forward pass of UNet2dBlock. Input/output NCHW, same as PyTorch."""
    n, cin, h, w = x_nchw.shape
    cout = params["w1"].shape[0]
    if 2 * pd != ks - 1:
        # TODO(synk): generalize the lane-roll im2col to non-'same' convs
        # (output grid != input grid); UNet blocks use ks=3, pd=1.
        raise NotImplementedError("kernel assumes a 'same' conv: 2*pd == ks-1")
    hw = h * w

    # Host-side glue: contiguous reshapes + tiny weight relayouts only.
    x_flat = x_nchw.reshape(n, cin, hw)

    def flat_w(wt):  # (O, I, kh, kw) -> (O, kh, kw, I) -> (O, ks*ks*I)
        o, i = wt.shape[0], wt.shape[1]
        return jnp.transpose(wt, (0, 2, 3, 1)).reshape(o, ks * ks * i)

    w1 = flat_w(params["w1"])
    w2 = flat_w(params["w2"])
    b1 = params["b1"].reshape(cout, 1)
    b2 = params["b2"].reshape(cout, 1)
    g1 = params["g1"].reshape(cout, 1)
    g2 = params["g2"].reshape(cout, 1)
    bt1 = params["beta1"].reshape(cout, 1)
    bt2 = params["beta2"].reshape(cout, 1)

    # Row / col index of each flattened pixel (used for the border masks).
    idx = jnp.arange(hw, dtype=jnp.int32)
    rc = jnp.stack([idx // w, idx % w]).astype(jnp.int32)    # (2, H*W)

    kernel = functools.partial(_unet2d_block_kernel,
                               ks=ks, pd=pd, h=h, w=w, eps=eps)

    out_flat = pl.pallas_call(
        kernel,
        out_shape=jax.ShapeDtypeStruct((n, cout, hw), x_nchw.dtype),
        grid_spec=pltpu.PrefetchScalarGridSpec(
            num_scalar_prefetch=0,
            grid=(n,),
            in_specs=[
                pl.BlockSpec((1, cin, hw), lambda i: (i, 0, 0)),
                pl.BlockSpec((2, hw), lambda i: (0, 0)),
                pl.BlockSpec((cout, ks * ks * cin), lambda i: (0, 0)),
                pl.BlockSpec((cout, 1), lambda i: (0, 0)),
                pl.BlockSpec((cout, 1), lambda i: (0, 0)),
                pl.BlockSpec((cout, 1), lambda i: (0, 0)),
                pl.BlockSpec((cout, ks * ks * cout), lambda i: (0, 0)),
                pl.BlockSpec((cout, 1), lambda i: (0, 0)),
                pl.BlockSpec((cout, 1), lambda i: (0, 0)),
                pl.BlockSpec((cout, 1), lambda i: (0, 0)),
            ],
            out_specs=pl.BlockSpec((1, cout, hw), lambda i: (i, 0, 0)),
            scratch_shapes=[
                pltpu.VMEM((ks * ks * cin, hw), x_nchw.dtype),
                pltpu.VMEM((ks * ks * cout, hw), jnp.float32),
            ]),
        # "parallel" batch axis lets v7x's two TensorCores each take samples;
        # no-op on v5e/v6e.  NOTE: whole-sample residency is fine at these
        # shapes; for real UNet resolutions, strip-tile H with a (ks-1) halo,
        # stream the GN sums, and set vmem_limit_bytes explicitly (v7x: 64 MiB).
        compiler_params=pltpu.CompilerParams(
            dimension_semantics=("parallel",)),
    )(x_flat, rc, w1, b1, g1, bt1, w2, b2, g2, bt2)

    return out_flat.reshape(n, cout, h, w)


# ----------------------------- reference (plain JAX) ------------------------
def _ref_stage(x, w_oihw, b, gamma, beta, *, pd, eps=1e-5):
    y = lax.conv_general_dilated(
        x.astype(jnp.float32), w_oihw.astype(jnp.float32),
        window_strides=(1, 1), padding=[(pd, pd), (pd, pd)],
        dimension_numbers=("NCHW", "OIHW", "NCHW"))
    y = y + b.reshape(1, -1, 1, 1)
    y = jnp.maximum(y, 0.0)
    mean = jnp.mean(y, axis=(1, 2, 3), keepdims=True)
    var = jnp.mean(jnp.square(y - mean), axis=(1, 2, 3), keepdims=True)
    y = (y - mean) * lax.rsqrt(var + eps)
    return y * gamma.reshape(1, -1, 1, 1) + beta.reshape(1, -1, 1, 1)


def _ref_unet2d_block(x, params, *, pd):
    y = _ref_stage(x, params["w1"], params["b1"], params["g1"],
                   params["beta1"], pd=pd)
    y = _ref_stage(y, params["w2"], params["b2"], params["g2"],
                   params["beta2"], pd=pd)
    return y


if __name__ == "__main__":
    # Small shapes consistent with the module: in_c=4, out_c=8, ks=3, pd=1.
    N, IN_C, OUT_C, H, W = 2, 4, 8, 16, 16
    KS, PD = 3, 1

    key = jax.random.PRNGKey(0)
    k_x, k_w1, k_b1, k_w2, k_b2, k_g1, k_g2 = jax.random.split(key, 7)

    x = jax.random.normal(k_x, (N, IN_C, H, W), dtype=jnp.float32)

    params = {
        # Conv2d(in_c, out_c, ks) weight: (out_c, in_c, ks, ks)
        "w1": 0.1 * jax.random.normal(k_w1, (OUT_C, IN_C, KS, KS), jnp.float32),
        "b1": 0.1 * jax.random.normal(k_b1, (OUT_C,), jnp.float32),
        # GroupNorm(1, out_c) affine (perturbed from ones/zeros to exercise it)
        "g1": 1.0 + 0.05 * jax.random.normal(k_g1, (OUT_C,), jnp.float32),
        "beta1": jnp.zeros((OUT_C,), jnp.float32),
        # Conv2d(out_c, out_c, ks) weight: (out_c, out_c, ks, ks)
        "w2": 0.1 * jax.random.normal(k_w2, (OUT_C, OUT_C, KS, KS), jnp.float32),
        "b2": 0.1 * jax.random.normal(k_b2, (OUT_C,), jnp.float32),
        "g2": 1.0 + 0.05 * jax.random.normal(k_g2, (OUT_C,), jnp.float32),
        "beta2": jnp.zeros((OUT_C,), jnp.float32),
    }

    out = unet2d_block(x, params, ks=KS, pd=PD)
    out = jax.block_until_ready(out)

    ref = jax.block_until_ready(_ref_unet2d_block(x, params, pd=PD))

    assert out.shape == (N, OUT_C, H, W), out.shape
    assert jnp.allclose(out, ref, atol=1e-3, rtol=1e-3), (
        float(jnp.max(jnp.abs(out - ref))))

    print("KERNEL_OK")
</pallas_src>

<mosaic_0001>
module attributes {stable_mosaic.version = 11 : i64} {
  func.func @_unet2d_block_kernel(%arg0: i32, %arg1: memref<1x4x256xf32, #tpu.memory_space<vmem>>, %arg2: memref<2x256xi32, #tpu.memory_space<vmem>>, %arg3: memref<8x36xf32, #tpu.memory_space<vmem>>, %arg4: memref<8x1xf32, #tpu.memory_space<vmem>>, %arg5: memref<8x1xf32, #tpu.memory_space<vmem>>, %arg6: memref<8x1xf32, #tpu.memory_space<vmem>>, %arg7: memref<8x72xf32, #tpu.memory_space<vmem>>, %arg8: memref<8x1xf32, #tpu.memory_space<vmem>>, %arg9: memref<8x1xf32, #tpu.memory_space<vmem>>, %arg10: memref<8x1xf32, #tpu.memory_space<vmem>>, %arg11: memref<1x8x256xf32, #tpu.memory_space<vmem>>, %arg12: memref<36x256xf32, #tpu.memory_space<vmem>>, %arg13: memref<72x256xf32, #tpu.memory_space<vmem>>) attributes {dimension_semantics = [#tpu.dimension_semantics<parallel>], iteration_bounds = array<i64: 2>, scalar_prefetch = 0 : i64, scratch_operands = 2 : i64, tpu.core_type = #tpu.core_type<tc>, window_params = [{transform_indices = @transform_0, window_bounds = array<i64: 1, 4, 256>}, {pipeline_mode = #tpu.pipeline_mode<synchronous>, transform_indices = @transform_1, window_bounds = array<i64: 2, 256>}, {pipeline_mode = #tpu.pipeline_mode<synchronous>, transform_indices = @transform_2, window_bounds = array<i64: 8, 36>}, {pipeline_mode = #tpu.pipeline_mode<synchronous>, transform_indices = @transform_3, window_bounds = array<i64: 8, 1>}, {pipeline_mode = #tpu.pipeline_mode<synchronous>, transform_indices = @transform_4, window_bounds = array<i64: 8, 1>}, {pipeline_mode = #tpu.pipeline_mode<synchronous>, transform_indices = @transform_5, window_bounds = array<i64: 8, 1>}, {pipeline_mode = #tpu.pipeline_mode<synchronous>, transform_indices = @transform_6, window_bounds = array<i64: 8, 72>}, {pipeline_mode = #tpu.pipeline_mode<synchronous>, transform_indices = @transform_7, window_bounds = array<i64: 8, 1>}, {pipeline_mode = #tpu.pipeline_mode<synchronous>, transform_indices = @transform_8, window_bounds = array<i64: 8, 1>}, {pipeline_mode = #tpu.pipeline_mode<synchronous>, transform_indices = @transform_9, window_bounds = array<i64: 8, 1>}, {transform_indices = @transform_10, window_bounds = array<i64: 1, 8, 256>}]} {
    %c0 = arith.constant 0 : index
    %c0_0 = arith.constant 0 : index
    %0 = vector.load %arg2[%c0, %c0_0] : memref<2x256xi32, #tpu.memory_space<vmem>>, vector<2x256xi32>
    %1 = vector.extract_strided_slice %0 {offsets = [0, 0], sizes = [1, 256], strides = [1, 1]} : vector<2x256xi32> to vector<1x256xi32>
    %2 = vector.extract_strided_slice %0 {offsets = [1, 0], sizes = [1, 256], strides = [1, 1]} : vector<2x256xi32> to vector<1x256xi32>
    %c0_1 = arith.constant 0 : index
    %c0_2 = arith.constant 0 : index
    %c0_3 = arith.constant 0 : index
    %3 = vector.load %arg1[%c0_1, %c0_2, %c0_3] : memref<1x4x256xf32, #tpu.memory_space<vmem>>, vector<1x4x256xf32>
    %4 = vector.shape_cast %3 : vector<1x4x256xf32> to vector<4x256xf32>
    %c17_i32 = arith.constant 17 : i32
    %5 = tpu.dynamic_rotate %4 by %c17_i32 dim 1 : vector<4x256xf32>, i32 -> vector<4x256xf32>
    %c1_i32 = arith.constant 1 : i32
    %6 = vector.broadcast %c1_i32 : i32 to vector<1x256xi32>
    %7 = arith.cmpi sge, %1, %6 : vector<1x256xi32>
    %c1_i32_4 = arith.constant 1 : i32
    %8 = vector.broadcast %c1_i32_4 : i32 to vector<1x256xi32>
    %9 = arith.cmpi sge, %2, %8 : vector<1x256xi32>
    %10 = arith.andi %7, %9 : vector<1x256xi1>
    %11 = arith.extui %10 : vector<1x256xi1> to vector<1x256xi32>
    %12 = arith.sitofp %11 : vector<1x256xi32> to vector<1x256xf32>
    %13 = vector.broadcast %12 : vector<1x256xf32> to vector<4x256xf32>
    %14 = arith.mulf %5, %13 : vector<4x256xf32>
    %c0_5 = arith.constant 0 : index
    %c0_6 = arith.constant 0 : index
    %15 = vector.load %arg12[%c0_5, %c0_6] : memref<36x256xf32, #tpu.memory_space<vmem>>, vector<4x256xf32>
    tpu.vector_store %arg12[%c0_5, %c0_6], %14 {strides = array<i32>} : memref<36x256xf32, #tpu.memory_space<vmem>>, vector<4x256xf32>,
    %c16_i32 = arith.constant 16 : i32
    %16 = tpu.dynamic_rotate %4 by %c16_i32 dim 1 : vector<4x256xf32>, i32 -> vector<4x256xf32>
    %c1_i32_7 = arith.constant 1 : i32
    %17 = vector.broadcast %c1_i32_7 : i32 to vector<1x256xi32>
    %18 = arith.cmpi sge, %1, %17 : vector<1x256xi32>
    %19 = arith.extui %18 : vector<1x256xi1> to vector<1x256xi32>
    %20 = arith.sitofp %19 : vector<1x256xi32> to vector<1x256xf32>
    %21 = vector.broadcast %20 : vector<1x256xf32> to vector<4x256xf32>
    %22 = arith.mulf %16, %21 : vector<4x256xf32>
    %c4 = arith.constant 4 : index
    %c0_8 = arith.constant 0 : index
    %23 = vector.load %arg12[%c4, %c0_8] : memref<36x256xf32, #tpu.memory_space<vmem>>, vector<4x256xf32>
    tpu.vector_store %arg12[%c4, %c0_8], %22 {strides = array<i32>} : memref<36x256xf32, #tpu.memory_space<vmem>>, vector<4x256xf32>,
    %c15_i32 = arith.constant 15 : i32
    %24 = tpu.dynamic_rotate %4 by %c15_i32 dim 1 : vector<4x256xf32>, i32 -> vector<4x256xf32>
    %c1_i32_9 = arith.constant 1 : i32
    %25 = vector.broadcast %c1_i32_9 : i32 to vector<1x256xi32>
    %26 = arith.cmpi sge, %1, %25 : vector<1x256xi32>
    %c15_i32_10 = arith.constant 15 : i32
    %27 = vector.broadcast %c15_i32_10 : i32 to vector<1x256xi32>
    %28 = arith.cmpi slt, %2, %27 : vector<1x256xi32>
    %29 = arith.andi %26, %28 : vector<1x256xi1>
    %30 = arith.extui %29 : vector<1x256xi1> to vector<1x256xi32>
    %31 = arith.sitofp %30 : vector<1x256xi32> to vector<1x256xf32>
    %32 = vector.broadcast %31 : vector<1x256xf32> to vector<4x256xf32>
    %33 = arith.mulf %24, %32 : vector<4x256xf32>
    %c8 = arith.constant 8 : index
    %c0_11 = arith.constant 0 : index
    %34 = vector.load %arg12[%c8, %c0_11] : memref<36x256xf32, #tpu.memory_space<vmem>>, vector<4x256xf32>
    tpu.vector_store %arg12[%c8, %c0_11], %33 {strides = array<i32>} : memref<36x256xf32, #tpu.memory_space<vmem>>, vector<4x256xf32>,
    %c1_i32_12 = arith.constant 1 : i32
    %35 = tpu.dynamic_rotate %4 by %c1_i32_12 dim 1 : vector<4x256xf32>, i32 -> vector<4x256xf32>
    %c1_i32_13 = arith.constant 1 : i32
    %36 = vector.broadcast %c1_i32_13 : i32 to vector<1x256xi32>
    %37 = arith.cmpi sge, %2, %36 : vector<1x256xi32>
    %38 = arith.extui %37 : vector<1x256xi1> to vector<1x256xi32>
    %39 = arith.sitofp %38 : vector<1x256xi32> to vector<1x256xf32>
    %40 = vector.broadcast %39 : vector<1x256xf32> to vector<4x256xf32>
    %41 = arith.mulf %35, %40 : vector<4x256xf32>
    %c12 = arith.constant 12 : index
    %c0_14 = arith.constant 0 : index
    %42 = vector.load %arg12[%c12, %c0_14] : memref<36x256xf32, #tpu.memory_space<vmem>>, vector<4x256xf32>
    tpu.vector_store %arg12[%c12, %c0_14], %41 {strides = array<i32>} : memref<36x256xf32, #tpu.memory_space<vmem>>, vector<4x256xf32>,
    %c16 = arith.constant 16 : index
    %c0_15 = arith.constant 0 : index
    %43 = vector.load %arg12[%c16, %c0_15] : memref<36x256xf32, #tpu.memory_space<vmem>>, vector<4x256xf32>
    tpu.vector_store %arg12[%c16, %c0_15], %4 {strides = array<i32>} : memref<36x256xf32, #tpu.memory_space<vmem>>, vector<4x256xf32>,
    %c255_i32 = arith.constant 255 : i32
    %44 = tpu.dynamic_rotate %4 by %c255_i32 dim 1 : vector<4x256xf32>, i32 -> vector<4x256xf32>
    %c15_i32_16 = arith.constant 15 : i32
    %45 = vector.broadcast %c15_i32_16 : i32 to vector<1x256xi32>
    %46 = arith.cmpi slt, %2, %45 : vector<1x256xi32>
    %47 = arith.extui %46 : vector<1x256xi1> to vector<1x256xi32>
    %48 = arith.sitofp %47 : vector<1x256xi32> to vector<1x256xf32>
    %49 = vector.broadcast %48 : vector<1x256xf32> to vector<4x256xf32>
    %50 = arith.mulf %44, %49 : vector<4x256xf32>
    %c20 = arith.constant 20 : index
    %c0_17 = arith.constant 0 : index
    %51 = vector.load %arg12[%c20, %c0_17] : memref<36x256xf32, #tpu.memory_space<vmem>>, vector<4x256xf32>
    tpu.vector_store %arg12[%c20, %c0_17], %50 {strides = array<i32>} : memref<36x256xf32, #tpu.memory_space<vmem>>, vector<4x256xf32>,
    %c241_i32 = arith.constant 241 : i32
    %52 = tpu.dynamic_rotate %4 by %c241_i32 dim 1 : vector<4x256xf32>, i32 -> vector<4x256xf32>
    %c15_i32_18 = arith.constant 15 : i32
    %53 = vector.broadcast %c15_i32_18 : i32 to vector<1x256xi32>
    %54 = arith.cmpi slt, %1, %53 : vector<1x256xi32>
    %c1_i32_19 = arith.constant 1 : i32
    %55 = vector.broadcast %c1_i32_19 : i32 to vector<1x256xi32>
    %56 = arith.cmpi sge, %2, %55 : vector<1x256xi32>
    %57 = arith.andi %54, %56 : vector<1x256xi1>
    %58 = arith.extui %57 : vector<1x256xi1> to vector<1x256xi32>
    %59 = arith.sitofp %58 : vector<1x256xi32> to vector<1x256xf32>
    %60 = vector.broadcast %59 : vector<1x256xf32> to vector<4x256xf32>
    %61 = arith.mulf %52, %60 : vector<4x256xf32>
    %c24 = arith.constant 24 : index
    %c0_20 = arith.constant 0 : index
    %62 = vector.load %arg12[%c24, %c0_20] : memref<36x256xf32, #tpu.memory_space<vmem>>, vector<4x256xf32>
    tpu.vector_store %arg12[%c24, %c0_20], %61 {strides = array<i32>} : memref<36x256xf32, #tpu.memory_space<vmem>>, vector<4x256xf32>,
    %c240_i32 = arith.constant 240 : i32
    %63 = tpu.dynamic_rotate %4 by %c240_i32 dim 1 : vector<4x256xf32>, i32 -> vector<4x256xf32>
    %c15_i32_21 = arith.constant 15 : i32
    %64 = vector.broadcast %c15_i32_21 : i32 to vector<1x256xi32>
    %65 = arith.cmpi slt, %1, %64 : vector<1x256xi32>
    %66 = arith.extui %65 : vector<1x256xi1> to vector<1x256xi32>
    %67 = arith.sitofp %66 : vector<1x256xi32> to vector<1x256xf32>
    %68 = vector.broadcast %67 : vector<1x256xf32> to vector<4x256xf32>
    %69 = arith.mulf %63, %68 : vector<4x256xf32>
    %c28 = arith.constant 28 : index
    %c0_22 = arith.constant 0 : index
    %70 = vector.load %arg12[%c28, %c0_22] : memref<36x256xf32, #tpu.memory_space<vmem>>, vector<4x256xf32>
    tpu.vector_store %arg12[%c28, %c0_22], %69 {strides = array<i32>} : memref<36x256xf32, #tpu.memory_space<vmem>>, vector<4x256xf32>,
    %c239_i32 = arith.constant 239 : i32
    %71 = tpu.dynamic_rotate %4 by %c239_i32 dim 1 : vector<4x256xf32>, i32 -> vector<4x256xf32>
    %c15_i32_23 = arith.constant 15 : i32
    %72 = vector.broadcast %c15_i32_23 : i32 to vector<1x256xi32>
    %73 = arith.cmpi slt, %1, %72 : vector<1x256xi32>
    %c15_i32_24 = arith.constant 15 : i32
    %74 = vector.broadcast %c15_i32_24 : i32 to vector<1x256xi32>
    %75 = arith.cmpi slt, %2, %74 : vector<1x256xi32>
    %76 = arith.andi %73, %75 : vector<1x256xi1>
    %77 = arith.extui %76 : vector<1x256xi1> to vector<1x256xi32>
    %78 = arith.sitofp %77 : vector<1x256xi32> to vector<1x256xf32>
    %79 = vector.broadcast %78 : vector<1x256xf32> to vector<4x256xf32>
    %80 = arith.mulf %71, %79 : vector<4x256xf32>
    %c32 = arith.constant 32 : index
    %c0_25 = arith.constant 0 : index
    %81 = vector.load %arg12[%c32, %c0_25] : memref<36x256xf32, #tpu.memory_space<vmem>>, vector<4x256xf32>
    tpu.vector_store %arg12[%c32, %c0_25], %80 {strides = array<i32>} : memref<36x256xf32, #tpu.memory_space<vmem>>, vector<4x256xf32>,
    %c0_26 = arith.constant 0 : index
    %c0_27 = arith.constant 0 : index
    %82 = vector.load %arg12[%c0_26, %c0_27] : memref<36x256xf32, #tpu.memory_space<vmem>>, vector<36x256xf32>
    %c0_28 = arith.constant 0 : index
    %c0_29 = arith.constant 0 : index
    %83 = vector.load %arg3[%c0_28, %c0_29] : memref<8x36xf32, #tpu.memory_space<vmem>>, vector<8x36xf32>
    %cst = arith.constant dense<0.000000e+00> : vector<8x256xf32>
    %84 = tpu.matmul %83, %82, %cst {dimension_numbers = #tpu.dot_dimension_numbers<[1], [0], [0], [1], [0, 0, 1, 1], [], []>} : vector<8x36xf32>, vector<36x256xf32>, vector<8x256xf32> -> vector<8x256xf32>
    %c0_30 = arith.constant 0 : index
    %c0_31 = arith.constant 0 : index
    %85 = vector.load %arg4[%c0_30, %c0_31] : memref<8x1xf32, #tpu.memory_space<vmem>>, vector<8x1xf32>
    %86 = vector.broadcast %85 : vector<8x1xf32> to vector<8x256xf32>
    %87 = arith.addf %84, %86 : vector<8x256xf32>
    %c0_32 = arith.constant 0 : index
    %c0_33 = arith.constant 0 : index
    %88 = vector.load %arg5[%c0_32, %c0_33] : memref<8x1xf32, #tpu.memory_space<vmem>>, vector<8x1xf32>
    %c0_34 = arith.constant 0 : index
    %c0_35 = arith.constant 0 : index
    %89 = vector.load %arg6[%c0_34, %c0_35] : memref<8x1xf32, #tpu.memory_space<vmem>>, vector<8x1xf32>
    %cst_36 = arith.constant 0.000000e+00 : f32
    %90 = vector.broadcast %cst_36 : f32 to vector<8x256xf32>
    %91 = arith.maximumf %87, %90 : vector<8x256xf32>
    %92 = vector.shape_cast %91 : vector<8x256xf32> to vector<1x8x256xf32>
    %cst_37 = arith.constant dense<0.000000e+00> : vector<1xf32>
    %93 = vector.multi_reduction <add>, %92, %cst_37 [1, 2] : vector<1x8x256xf32> to vector<1xf32>
    %94 = vector.shape_cast %93 : vector<1xf32> to vector<1x1x1xf32>
    %95 = vector.extract %94[0, 0, 0] : f32 from vector<1x1x1xf32>
    %cst_38 = arith.constant 4.8828125E-4 : f32
    %96 = arith.mulf %95, %cst_38 : f32
    %97 = arith.mulf %91, %91 : vector<8x256xf32>
    %98 = vector.shape_cast %97 : vector<8x256xf32> to vector<1x8x256xf32>
    %cst_39 = arith.constant dense<0.000000e+00> : vector<1xf32>
    %99 = vector.multi_reduction <add>, %98, %cst_39 [1, 2] : vector<1x8x256xf32> to vector<1xf32>
    %100 = vector.shape_cast %99 : vector<1xf32> to vector<1x1x1xf32>
    %101 = vector.extract %100[0, 0, 0] : f32 from vector<1x1x1xf32>
    %cst_40 = arith.constant 4.8828125E-4 : f32
    %102 = arith.mulf %101, %cst_40 : f32
    %103 = arith.mulf %96, %96 : f32
    %104 = arith.subf %102, %103 : f32
    %105 = vector.broadcast %96 : f32 to vector<8x256xf32>
    %106 = arith.subf %91, %105 : vector<8x256xf32>
    %cst_41 = arith.constant 9.99999974E-6 : f32
    %107 = arith.addf %104, %cst_41 : f32
    %108 = math.rsqrt %107 : f32
    %109 = vector.broadcast %108 : f32 to vector<8x256xf32>
    %110 = arith.mulf %106, %109 : vector<8x256xf32>
    %111 = vector.broadcast %88 : vector<8x1xf32> to vector<8x256xf32>
    %112 = arith.mulf %110, %111 : vector<8x256xf32>
    %113 = vector.broadcast %89 : vector<8x1xf32> to vector<8x256xf32>
    %114 = arith.addf %112, %113 : vector<8x256xf32>
    %c17_i32_42 = arith.constant 17 : i32
    %115 = tpu.dynamic_rotate %114 by %c17_i32_42 dim 1 : vector<8x256xf32>, i32 -> vector<8x256xf32>
    %c1_i32_43 = arith.constant 1 : i32
    %116 = vector.broadcast %c1_i32_43 : i32 to vector<1x256xi32>
    %117 = arith.cmpi sge, %1, %116 : vector<1x256xi32>
    %c1_i32_44 = arith.constant 1 : i32
    %118 = vector.broadcast %c1_i32_44 : i32 to vector<1x256xi32>
    %119 = arith.cmpi sge, %2, %118 : vector<1x256xi32>
    %120 = arith.andi %117, %119 : vector<1x256xi1>
    %121 = arith.extui %120 : vector<1x256xi1> to vector<1x256xi32>
    %122 = arith.sitofp %121 : vector<1x256xi32> to vector<1x256xf32>
    %123 = vector.broadcast %122 : vector<1x256xf32> to vector<8x256xf32>
    %124 = arith.mulf %115, %123 : vector<8x256xf32>
    %c0_45 = arith.constant 0 : index
    %c0_46 = arith.constant 0 : index
    %125 = vector.load %arg13[%c0_45, %c0_46] : memref<72x256xf32, #tpu.memory_space<vmem>>, vector<8x256xf32>
    tpu.vector_store %arg13[%c0_45, %c0_46], %124 {strides = array<i32>} : memref<72x256xf32, #tpu.memory_space<vmem>>, vector<8x256xf32>,
    %c16_i32_47 = arith.constant 16 : i32
    %126 = tpu.dynamic_rotate %114 by %c16_i32_47 dim 1 : vector<8x256xf32>, i32 -> vector<8x256xf32>
    %c1_i32_48 = arith.constant 1 : i32
    %127 = vector.broadcast %c1_i32_48 : i32 to vector<1x256xi32>
    %128 = arith.cmpi sge, %1, %127 : vector<1x256xi32>
    %129 = arith.extui %128 : vector<1x256xi1> to vector<1x256xi32>
    %130 = arith.sitofp %129 : vector<1x256xi32> to vector<1x256xf32>
    %131 = vector.broadcast %130 : vector<1x256xf32> to vector<8x256xf32>
    %132 = arith.mulf %126, %131 : vector<8x256xf32>
    %c8_49 = arith.constant 8 : index
    %c0_50 = arith.constant 0 : index
    %133 = vector.load %arg13[%c8_49, %c0_50] : memref<72x256xf32, #tpu.memory_space<vmem>>, vector<8x256xf32>
    tpu.vector_store %arg13[%c8_49, %c0_50], %132 {strides = array<i32>} : memref<72x256xf32, #tpu.memory_space<vmem>>, vector<8x256xf32>,
    %c15_i32_51 = arith.constant 15 : i32
    %134 = tpu.dynamic_rotate %114 by %c15_i32_51 dim 1 : vector<8x256xf32>, i32 -> vector<8x256xf32>
    %c1_i32_52 = arith.constant 1 : i32
    %135 = vector.broadcast %c1_i32_52 : i32 to vector<1x256xi32>
    %136 = arith.cmpi sge, %1, %135 : vector<1x256xi32>
    %c15_i32_53 = arith.constant 15 : i32
    %137 = vector.broadcast %c15_i32_53 : i32 to vector<1x256xi32>
    %138 = arith.cmpi slt, %2, %137 : vector<1x256xi32>
    %139 = arith.andi %136, %138 : vector<1x256xi1>
    %140 = arith.extui %139 : vector<1x256xi1> to vector<1x256xi32>
    %141 = arith.sitofp %140 : vector<1x256xi32> to vector<1x256xf32>
    %142 = vector.broadcast %141 : vector<1x256xf32> to vector<8x256xf32>
    %143 = arith.mulf %134, %142 : vector<8x256xf32>
    %c16_54 = arith.constant 16 : index
    %c0_55 = arith.constant 0 : index
    %144 = vector.load %arg13[%c16_54, %c0_55] : memref<72x256xf32, #tpu.memory_space<vmem>>, vector<8x256xf32>
    tpu.vector_store %arg13[%c16_54, %c0_55], %143 {strides = array<i32>} : memref<72x256xf32, #tpu.memory_space<vmem>>, vector<8x256xf32>,
    %c1_i32_56 = arith.constant 1 : i32
    %145 = tpu.dynamic_rotate %114 by %c1_i32_56 dim 1 : vector<8x256xf32>, i32 -> vector<8x256xf32>
    %c1_i32_57 = arith.constant 1 : i32
    %146 = vector.broadcast %c1_i32_57 : i32 to vector<1x256xi32>
    %147 = arith.cmpi sge, %2, %146 : vector<1x256xi32>
    %148 = arith.extui %147 : vector<1x256xi1> to vector<1x256xi32>
    %149 = arith.sitofp %148 : vector<1x256xi32> to vector<1x256xf32>
    %150 = vector.broadcast %149 : vector<1x256xf32> to vector<8x256xf32>
    %151 = arith.mulf %145, %150 : vector<8x256xf32>
    %c24_58 = arith.constant 24 : index
    %c0_59 = arith.constant 0 : index
    %152 = vector.load %arg13[%c24_58, %c0_59] : memref<72x256xf32, #tpu.memory_space<vmem>>, vector<8x256xf32>
    tpu.vector_store %arg13[%c24_58, %c0_59], %151 {strides = array<i32>} : memref<72x256xf32, #tpu.memory_space<vmem>>, vector<8x256xf32>,
    %c32_60 = arith.constant 32 : index
    %c0_61 = arith.constant 0 : index
    %153 = vector.load %arg13[%c32_60, %c0_61] : memref<72x256xf32, #tpu.memory_space<vmem>>, vector<8x256xf32>
    tpu.vector_store %arg13[%c32_60, %c0_61], %114 {strides = array<i32>} : memref<72x256xf32, #tpu.memory_space<vmem>>, vector<8x256xf32>,
    %c255_i32_62 = arith.constant 255 : i32
    %154 = tpu.dynamic_rotate %114 by %c255_i32_62 dim 1 : vector<8x256xf32>, i32 -> vector<8x256xf32>
    %c15_i32_63 = arith.constant 15 : i32
    %155 = vector.broadcast %c15_i32_63 : i32 to vector<1x256xi32>
    %156 = arith.cmpi slt, %2, %155 : vector<1x256xi32>
    %157 = arith.extui %156 : vector<1x256xi1> to vector<1x256xi32>
    %158 = arith.sitofp %157 : vector<1x256xi32> to vector<1x256xf32>
    %159 = vector.broadcast %158 : vector<1x256xf32> to vector<8x256xf32>
    %160 = arith.mulf %154, %159 : vector<8x256xf32>
    %c40 = arith.constant 40 : index
    %c0_64 = arith.constant 0 : index
    %161 = vector.load %arg13[%c40, %c0_64] : memref<72x256xf32, #tpu.memory_space<vmem>>, vector<8x256xf32>
    tpu.vector_store %arg13[%c40, %c0_64], %160 {strides = array<i32>} : memref<72x256xf32, #tpu.memory_space<vmem>>, vector<8x256xf32>,
    %c241_i32_65 = arith.constant 241 : i32
    %162 = tpu.dynamic_rotate %114 by %c241_i32_65 dim 1 : vector<8x256xf32>, i32 -> vector<8x256xf32>
    %c15_i32_66 = arith.constant 15 : i32
    %163 = vector.broadcast %c15_i32_66 : i32 to vector<1x256xi32>
    %164 = arith.cmpi slt, %1, %163 : vector<1x256xi32>
    %c1_i32_67 = arith.constant 1 : i32
    %165 = vector.broadcast %c1_i32_67 : i32 to vector<1x256xi32>
    %166 = arith.cmpi sge, %2, %165 : vector<1x256xi32>
    %167 = arith.andi %164, %166 : vector<1x256xi1>
    %168 = arith.extui %167 : vector<1x256xi1> to vector<1x256xi32>
    %169 = arith.sitofp %168 : vector<1x256xi32> to vector<1x256xf32>
    %170 = vector.broadcast %169 : vector<1x256xf32> to vector<8x256xf32>
    %171 = arith.mulf %162, %170 : vector<8x256xf32>
    %c48 = arith.constant 48 : index
    %c0_68 = arith.constant 0 : index
    %172 = vector.load %arg13[%c48, %c0_68] : memref<72x256xf32, #tpu.memory_space<vmem>>, vector<8x256xf32>
    tpu.vector_store %arg13[%c48, %c0_68], %171 {strides = array<i32>} : memref<72x256xf32, #tpu.memory_space<vmem>>, vector<8x256xf32>,
    %c240_i32_69 = arith.constant 240 : i32
    %173 = tpu.dynamic_rotate %114 by %c240_i32_69 dim 1 : vector<8x256xf32>, i32 -> vector<8x256xf32>
    %c15_i32_70 = arith.constant 15 : i32
    %174 = vector.broadcast %c15_i32_70 : i32 to vector<1x256xi32>
    %175 = arith.cmpi slt, %1, %174 : vector<1x256xi32>
    %176 = arith.extui %175 : vector<1x256xi1> to vector<1x256xi32>
    %177 = arith.sitofp %176 : vector<1x256xi32> to vector<1x256xf32>
    %178 = vector.broadcast %177 : vector<1x256xf32> to vector<8x256xf32>
    %179 = arith.mulf %173, %178 : vector<8x256xf32>
    %c56 = arith.constant 56 : index
    %c0_71 = arith.constant 0 : index
    %180 = vector.load %arg13[%c56, %c0_71] : memref<72x256xf32, #tpu.memory_space<vmem>>, vector<8x256xf32>
    tpu.vector_store %arg13[%c56, %c0_71], %179 {strides = array<i32>} : memref<72x256xf32, #tpu.memory_space<vmem>>, vector<8x256xf32>,
    %c239_i32_72 = arith.constant 239 : i32
    %181 = tpu.dynamic_rotate %114 by %c239_i32_72 dim 1 : vector<8x256xf32>, i32 -> vector<8x256xf32>
    %c15_i32_73 = arith.constant 15 : i32
    %182 = vector.broadcast %c15_i32_73 : i32 to vector<1x256xi32>
    %183 = arith.cmpi slt, %1, %182 : vector<1x256xi32>
    %c15_i32_74 = arith.constant 15 : i32
    %184 = vector.broadcast %c15_i32_74 : i32 to vector<1x256xi32>
    %185 = arith.cmpi slt, %2, %184 : vector<1x256xi32>
    %186 = arith.andi %183, %185 : vector<1x256xi1>
    %187 = arith.extui %186 : vector<1x256xi1> to vector<1x256xi32>
    %188 = arith.sitofp %187 : vector<1x256xi32> to vector<1x256xf32>
    %189 = vector.broadcast %188 : vector<1x256xf32> to vector<8x256xf32>
    %190 = arith.mulf %181, %189 : vector<8x256xf32>
    %c64 = arith.constant 64 : index
    %c0_75 = arith.constant 0 : index
    %191 = vector.load %arg13[%c64, %c0_75] : memref<72x256xf32, #tpu.memory_space<vmem>>, vector<8x256xf32>
    tpu.vector_store %arg13[%c64, %c0_75], %190 {strides = array<i32>} : memref<72x256xf32, #tpu.memory_space<vmem>>, vector<8x256xf32>,
    %c0_76 = arith.constant 0 : index
    %c0_77 = arith.constant 0 : index
    %192 = vector.load %arg13[%c0_76, %c0_77] : memref<72x256xf32, #tpu.memory_space<vmem>>, vector<72x256xf32>
    %c0_78 = arith.constant 0 : index
    %c0_79 = arith.constant 0 : index
    %193 = vector.load %arg7[%c0_78, %c0_79] : memref<8x72xf32, #tpu.memory_space<vmem>>, vector<8x72xf32>
    %cst_80 = arith.constant dense<0.000000e+00> : vector<8x256xf32>
    %194 = tpu.matmul %193, %192, %cst_80 {dimension_numbers = #tpu.dot_dimension_numbers<[1], [0], [0], [1], [0, 0, 1, 1], [], []>} : vector<8x72xf32>, vector<72x256xf32>, vector<8x256xf32> -> vector<8x256xf32>
    %c0_81 = arith.constant 0 : index
    %c0_82 = arith.constant 0 : index
    %195 = vector.load %arg8[%c0_81, %c0_82] : memref<8x1xf32, #tpu.memory_space<vmem>>, vector<8x1xf32>
    %196 = vector.broadcast %195 : vector<8x1xf32> to vector<8x256xf32>
    %197 = arith.addf %194, %196 : vector<8x256xf32>
    %c0_83 = arith.constant 0 : index
    %c0_84 = arith.constant 0 : index
    %198 = vector.load %arg9[%c0_83, %c0_84] : memref<8x1xf32, #tpu.memory_space<vmem>>, vector<8x1xf32>
    %c0_85 = arith.constant 0 : index
    %c0_86 = arith.constant 0 : index
    %199 = vector.load %arg10[%c0_85, %c0_86] : memref<8x1xf32, #tpu.memory_space<vmem>>, vector<8x1xf32>
    %cst_87 = arith.constant 0.000000e+00 : f32
    %200 = vector.broadcast %cst_87 : f32 to vector<8x256xf32>
    %201 = arith.maximumf %197, %200 : vector<8x256xf32>
    %202 = vector.shape_cast %201 : vector<8x256xf32> to vector<1x8x256xf32>
    %cst_88 = arith.constant dense<0.000000e+00> : vector<1xf32>
    %203 = vector.multi_reduction <add>, %202, %cst_88 [1, 2] : vector<1x8x256xf32> to vector<1xf32>
    %204 = vector.shape_cast %203 : vector<1xf32> to vector<1x1x1xf32>
    %205 = vector.extract %204[0, 0, 0] : f32 from vector<1x1x1xf32>
    %cst_89 = arith.constant 4.8828125E-4 : f32
    %206 = arith.mulf %205, %cst_89 : f32
    %207 = arith.mulf %201, %201 : vector<8x256xf32>
    %208 = vector.shape_cast %207 : vector<8x256xf32> to vector<1x8x256xf32>
    %cst_90 = arith.constant dense<0.000000e+00> : vector<1xf32>
    %209 = vector.multi_reduction <add>, %208, %cst_90 [1, 2] : vector<1x8x256xf32> to vector<1xf32>
    %210 = vector.shape_cast %209 : vector<1xf32> to vector<1x1x1xf32>
    %211 = vector.extract %210[0, 0, 0] : f32 from vector<1x1x1xf32>
    %cst_91 = arith.constant 4.8828125E-4 : f32
    %212 = arith.mulf %211, %cst_91 : f32
    %213 = arith.mulf %206, %206 : f32
    %214 = arith.subf %212, %213 : f32
    %215 = vector.broadcast %206 : f32 to vector<8x256xf32>
    %216 = arith.subf %201, %215 : vector<8x256xf32>
    %cst_92 = arith.constant 9.99999974E-6 : f32
    %217 = arith.addf %214, %cst_92 : f32
    %218 = math.rsqrt %217 : f32
    %219 = vector.broadcast %218 : f32 to vector<8x256xf32>
    %220 = arith.mulf %216, %219 : vector<8x256xf32>
    %221 = vector.broadcast %198 : vector<8x1xf32> to vector<8x256xf32>
    %222 = arith.mulf %220, %221 : vector<8x256xf32>
    %223 = vector.broadcast %199 : vector<8x1xf32> to vector<8x256xf32>
    %224 = arith.addf %222, %223 : vector<8x256xf32>
    %c0_93 = arith.constant 0 : index
    %c0_94 = arith.constant 0 : index
    %c0_95 = arith.constant 0 : index
    %225 = vector.load %arg11[%c0_93, %c0_94, %c0_95] : memref<1x8x256xf32, #tpu.memory_space<vmem>>, vector<1x8x256xf32>
    %226 = vector.shape_cast %225 : vector<1x8x256xf32> to vector<8x256xf32>
    %227 = vector.shape_cast %224 : vector<8x256xf32> to vector<1x8x256xf32>
    tpu.vector_store %arg11[%c0_93, %c0_94, %c0_95], %227 {strides = array<i32>} : memref<1x8x256xf32, #tpu.memory_space<vmem>>, vector<1x8x256xf32>,
    return
  }
  func.func @transform_0(%arg0: i32) -> (i32, i32, i32) {
    %c0_i32 = arith.constant 0 : i32
    %c0_i32_0 = arith.constant 0 : i32
    %c0_i32_1 = arith.constant 0 : i32
    return %arg0, %c0_i32, %c0_i32_0 : i32, i32, i32
  }
  func.func @transform_1(%arg0: i32) -> (i32, i32) {
    %c0_i32 = arith.constant 0 : i32
    %c0_i32_0 = arith.constant 0 : i32
    %c0_i32_1 = arith.constant 0 : i32
    return %c0_i32, %c0_i32_0 : i32, i32
  }
  func.func @transform_2(%arg0: i32) -> (i32, i32) {
    %c0_i32 = arith.constant 0 : i32
    %c0_i32_0 = arith.constant 0 : i32
    %c0_i32_1 = arith.constant 0 : i32
    return %c0_i32, %c0_i32_0 : i32, i32
  }
  func.func @transform_3(%arg0: i32) -> (i32, i32) {
    %c0_i32 = arith.constant 0 : i32
    %c0_i32_0 = arith.constant 0 : i32
    %c0_i32_1 = arith.constant 0 : i32
    return %c0_i32, %c0_i32_0 : i32, i32
  }
  func.func @transform_4(%arg0: i32) -> (i32, i32) {
    %c0_i32 = arith.constant 0 : i32
    %c0_i32_0 = arith.constant 0 : i32
    %c0_i32_1 = arith.constant 0 : i32
    return %c0_i32, %c0_i32_0 : i32, i32
  }
  func.func @transform_5(%arg0: i32) -> (i32, i32) {
    %c0_i32 = arith.constant 0 : i32
    %c0_i32_0 = arith.constant 0 : i32
    %c0_i32_1 = arith.constant 0 : i32
    return %c0_i32, %c0_i32_0 : i32, i32
  }
  func.func @transform_6(%arg0: i32) -> (i32, i32) {
    %c0_i32 = arith.constant 0 : i32
    %c0_i32_0 = arith.constant 0 : i32
    %c0_i32_1 = arith.constant 0 : i32
    return %c0_i32, %c0_i32_0 : i32, i32
  }
  func.func @transform_7(%arg0: i32) -> (i32, i32) {
    %c0_i32 = arith.constant 0 : i32
    %c0_i32_0 = arith.constant 0 : i32
    %c0_i32_1 = arith.constant 0 : i32
    return %c0_i32, %c0_i32_0 : i32, i32
  }
  func.func @transform_8(%arg0: i32) -> (i32, i32) {
    %c0_i32 = arith.constant 0 : i32
    %c0_i32_0 = arith.constant 0 : i32
    %c0_i32_1 = arith.constant 0 : i32
    return %c0_i32, %c0_i32_0 : i32, i32
  }
  func.func @transform_9(%arg0: i32) -> (i32, i32) {
    %c0_i32 = arith.constant 0 : i32
    %c0_i32_0 = arith.constant 0 : i32
    %c0_i32_1 = arith.constant 0 : i32
    return %c0_i32, %c0_i32_0 : i32, i32
  }
  func.func @transform_10(%arg0: i32) -> (i32, i32, i32) {
    %c0_i32 = arith.constant 0 : i32
    %c0_i32_0 = arith.constant 0 : i32
    %c0_i32_1 = arith.constant 0 : i32
    return %arg0, %c0_i32, %c0_i32_0 : i32, i32, i32
  }
}

</mosaic_0001>

<llo_original>
// kernel: tpu_custom_call.1
$region0: #{tpu_custom_call.1}
  #allocation0 [shape = 'u32[]', space=smem, size = 0x4, offset = 0x4, fixed_abs, tag = 'smem constant byte address 0x4 - core index']
  #allocation1 [shape = 'u32[144,128]{1,0:T(1,128)}', space=vmem, size = 0x12000, scoped, tag = 'internal scratch']
  #allocation2 [shape = 'f32[36,256]{1,0:T(8,128)}', space=vmem, size = 0xa000, scoped, tag = 'scratch operand']
  #allocation3 [shape = 'f32[72,256]{1,0:T(8,128)}', space=vmem, size = 0x12000, scoped, tag = 'scratch operand']
  %s0 = inlined_call_operand.vmem [shape: f32[2,4,256], index: 0, kind: input, shape index: {}]
  %s1 = inlined_call_operand.vmem [shape: s32[2,256], index: 1, kind: input, shape index: {}]
  %s2 = inlined_call_operand.vmem [shape: f32[8,36], index: 2, kind: input, shape index: {}]
  %s3 = inlined_call_operand.vmem [shape: f32[8,1], index: 3, kind: input, shape index: {}]
  %s4 = inlined_call_operand.vmem [shape: f32[8,1], index: 4, kind: input, shape index: {}]
  %s5 = inlined_call_operand.vmem [shape: f32[8,1], index: 5, kind: input, shape index: {}]
  %s6 = inlined_call_operand.vmem [shape: f32[8,72], index: 6, kind: input, shape index: {}]
  %s7 = inlined_call_operand.vmem [shape: f32[8,1], index: 7, kind: input, shape index: {}]
  %s8 = inlined_call_operand.vmem [shape: f32[8,1], index: 8, kind: input, shape index: {}]
  %s9 = inlined_call_operand.vmem [shape: f32[8,1], index: 9, kind: input, shape index: {}]
  %s10 = inlined_call_operand.hbm [shape: f32[2,8,256], index: 10, kind: output, shape index: {}]
  %s11 = sld [smem:[#allocation0]]
  $region73: #{tpu_custom_call.1} parent=0
    _
  %s13 = ssub.s32 1, %s11
  %s14 = scalar_select 0, %s13, %s11
  $region1: #{tpu_custom_call.1} parent=0
    #allocation4 [shape = 'u8[16384]{0}', space=vmem, size = 0x4000, scoped, tag = 'output window, operand 0']
    #allocation5 [shape = 's32[2]{0}', space=sflag, size = 0x8, scoped, tag = 'scoped memory for tpu_custom_call.1']
    %15 = vsyncpa [#allocation5], 0
    %s16 = scalar_lea.sflag [#allocation5], 1
    %17 = vsyncpa %s16, 0
    loop: start=0, step=1, limit=4
    $region2: #{tpu_custom_call.1} parent=1 // loop_pre_header
      _
    $region3: #{tpu_custom_call.1} parent=1 // loop_header
      %s19 = sphi 0, %s23
      %p20 = scmp.ge.s32.totalorder %s19, 4
      %s29 = sphi 0, %s31
      %s32 = sphi 0, %s29
      %s33 = sphi 0, %s32
      %s49 = sphi 0, %s33
      %s53 = sphi 0, %s53
      %s55 = sphi 0, %s53
      %s56 = sphi 0, %s55
      %s70 = sphi 0, %s56
      %s74 = sphi 0, %s74
      %s76 = sphi 0, %s74
      %s77 = sphi 0, %s76
      %s91 = sphi 0, %s77
      %s95 = sphi 0, %s95
      %s97 = sphi 0, %s95
      %s98 = sphi 0, %s97
      %s112 = sphi 0, %s98
      %s116 = sphi 0, %s116
      %s118 = sphi 0, %s116
      %s119 = sphi 0, %s118
      %s133 = sphi 0, %s119
      %s137 = sphi 0, %s137
      %s139 = sphi 0, %s137
      %s140 = sphi 0, %s139
      %s154 = sphi 0, %s140
      %s158 = sphi 0, %s158
      %s160 = sphi 0, %s158
      %s161 = sphi 0, %s160
      %s175 = sphi 0, %s161
      %s179 = sphi 0, %s179
      %s181 = sphi 0, %s179
      %s182 = sphi 0, %s181
      %s196 = sphi 0, %s182
      %s200 = sphi 0, %s200
      %s202 = sphi 0, %s200
      %s203 = sphi 0, %s202
      %s217 = sphi 0, %s203
      %s221 = sphi 0, %s221
      %s223 = sphi 0, %s221
      %s224 = sphi 0, %s223
      %s238 = sphi 0, %s224
      %s244 = sphi 0, %s246
      %s247 = sphi 0, %s244
      %s248 = sphi 0, %s247
      %s264 = sphi 0, %s248
    $region4: #{tpu_custom_call.1} parent=1 // loop_header_branch
      %22 = sbr.rel (%p20) target = $region8
    $region5: #{tpu_custom_call.1} parent=1 // loop_body
      %s24 = ssub.s32 %s19, 1
      %s25 = ssub.s32 %s19, 2
      %s26 = sadd.s32 %s19, 1
      %s27 = ssub.s32 %s19, %s26
      %p28 = scmp.eq.s32.totalorder %s27, 0
      %s30 = sadd.s32 %s29, 1
      %s31 = scalar_select %p28, %s29, %s30
      %p34 = pneg %p28
      %p35 = scmp.eq.s32.totalorder %s19, 1
      %p36 = por %p34, %p35
      %p37 = scmp.ne.s32.totalorder %s29, %s32
      %p38 = scmp.eq.s32.totalorder %s19, 0
      %p39 = por %p37, %p38
      %p40 = scmp.ne.s32.totalorder %s29, %s32
      %p41 = scmp.eq.s32.totalorder %s24, 1
      %p42 = por %p40, %p41
      %p43 = scmp.ne.s32.totalorder %s32, %s33
      %p44 = scmp.eq.s32.totalorder %s24, 0
      %p45 = por %p43, %p44
      %p46 = scmp.ne.s32.totalorder %s32, %s33
      %p47 = scmp.eq.s32.totalorder %s25, 1
      %p48 = por %p46, %p47
      %p50 = scmp.ne.s32.totalorder %s33, %s49
      %p51 = scmp.eq.s32.totalorder %s25, 0
      %p52 = por %p50, %p51
      %s54 = sadd.s32 %s53, 1
      %p57 = scmp.eq.s32.totalorder %s19, 1
      %p58 = scmp.ne.s32.totalorder %s53, %s55
      %p59 = scmp.eq.s32.totalorder %s19, 0
      %p60 = por %p58, %p59
      %p61 = scmp.ne.s32.totalorder %s53, %s55
      %p62 = scmp.eq.s32.totalorder %s24, 1
      %p63 = por %p61, %p62
      %p64 = scmp.ne.s32.totalorder %s55, %s56
      %p65 = scmp.eq.s32.totalorder %s24, 0
      %p66 = por %p64, %p65
      %p67 = scmp.ne.s32.totalorder %s55, %s56
      %p68 = scmp.eq.s32.totalorder %s25, 1
      %p69 = por %p67, %p68
      %p71 = scmp.ne.s32.totalorder %s56, %s70
      %p72 = scmp.eq.s32.totalorder %s25, 0
      %p73 = por %p71, %p72
      %s75 = sadd.s32 %s74, 1
      %p78 = scmp.eq.s32.totalorder %s19, 1
      %p79 = scmp.ne.s32.totalorder %s74, %s76
      %p80 = scmp.eq.s32.totalorder %s19, 0
      %p81 = por %p79, %p80
      %p82 = scmp.ne.s32.totalorder %s74, %s76
      %p83 = scmp.eq.s32.totalorder %s24, 1
      %p84 = por %p82, %p83
      %p85 = scmp.ne.s32.totalorder %s76, %s77
      %p86 = scmp.eq.s32.totalorder %s24, 0
      %p87 = por %p85, %p86
      %p88 = scmp.ne.s32.totalorder %s76, %s77
      %p89 = scmp.eq.s32.totalorder %s25, 1
      %p90 = por %p88, %p89
      %p92 = scmp.ne.s32.totalorder %s77, %s91
      %p93 = scmp.eq.s32.totalorder %s25, 0
      %p94 = por %p92, %p93
      %s96 = sadd.s32 %s95, 1
      %p99 = scmp.eq.s32.totalorder %s19, 1
      %p100 = scmp.ne.s32.totalorder %s95, %s97
      %p101 = scmp.eq.s32.totalorder %s19, 0
      %p102 = por %p100, %p101
      %p103 = scmp.ne.s32.totalorder %s95, %s97
      %p104 = scmp.eq.s32.totalorder %s24, 1
      %p105 = por %p103, %p104
      %p106 = scmp.ne.s32.totalorder %s97, %s98
      %p107 = scmp.eq.s32.totalorder %s24, 0
      %p108 = por %p106, %p107
      %p109 = scmp.ne.s32.totalorder %s97, %s98
      %p110 = scmp.eq.s32.totalorder %s25, 1
      %p111 = por %p109, %p110
      %p113 = scmp.ne.s32.totalorder %s98, %s112
      %p114 = scmp.eq.s32.totalorder %s25, 0
      %p115 = por %p113, %p114
      %s117 = sadd.s32 %s116, 1
      %p120 = scmp.eq.s32.totalorder %s19, 1
      %p121 = scmp.ne.s32.totalorder %s116, %s118
      %p122 = scmp.eq.s32.totalorder %s19, 0
      %p123 = por %p121, %p122
      %p124 = scmp.ne.s32.totalorder %s116, %s118
      %p125 = scmp.eq.s32.totalorder %s24, 1
      %p126 = por %p124, %p125
      %p127 = scmp.ne.s32.totalorder %s118, %s119
      %p128 = scmp.eq.s32.totalorder %s24, 0
      %p129 = por %p127, %p128
      %p130 = scmp.ne.s32.totalorder %s118, %s119
      %p131 = scmp.eq.s32.totalorder %s25, 1
      %p132 = por %p130, %p131
      %p134 = scmp.ne.s32.totalorder %s119, %s133
      %p135 = scmp.eq.s32.totalorder %s25, 0
      %p136 = por %p134, %p135
      %s138 = sadd.s32 %s137, 1
      %p141 = scmp.eq.s32.totalorder %s19, 1
      %p142 = scmp.ne.s32.totalorder %s137, %s139
      %p143 = scmp.eq.s32.totalorder %s19, 0
      %p144 = por %p142, %p143
      %p145 = scmp.ne.s32.totalorder %s137, %s139
      %p146 = scmp.eq.s32.totalorder %s24, 1
      %p147 = por %p145, %p146
      %p148 = scmp.ne.s32.totalorder %s139, %s140
      %p149 = scmp.eq.s32.totalorder %s24, 0
      %p150 = por %p148, %p149
      %p151 = scmp.ne.s32.totalorder %s139, %s140
      %p152 = scmp.eq.s32.totalorder %s25, 1
      %p153 = por %p151, %p152
      %p155 = scmp.ne.s32.totalorder %s140, %s154
      %p156 = scmp.eq.s32.totalorder %s25, 0
      %p157 = por %p155, %p156
      %s159 = sadd.s32 %s158, 1
      %p162 = scmp.eq.s32.totalorder %s19, 1
      %p163 = scmp.ne.s32.totalorder %s158, %s160
      %p164 = scmp.eq.s32.totalorder %s19, 0
      %p165 = por %p163, %p164
      %p166 = scmp.ne.s32.totalorder %s158, %s160
      %p167 = scmp.eq.s32.totalorder %s24, 1
      %p168 = por %p166, %p167
      %p169 = scmp.ne.s32.totalorder %s160, %s161
      %p170 = scmp.eq.s32.totalorder %s24, 0
      %p171 = por %p169, %p170
      %p172 = scmp.ne.s32.totalorder %s160, %s161
      %p173 = scmp.eq.s32.totalorder %s25, 1
      %p174 = por %p172, %p173
      %p176 = scmp.ne.s32.totalorder %s161, %s175
      %p177 = scmp.eq.s32.totalorder %s25, 0
      %p178 = por %p176, %p177
      %s180 = sadd.s32 %s179, 1
      %p183 = scmp.eq.s32.totalorder %s19, 1
      %p184 = scmp.ne.s32.totalorder %s179, %s181
      %p185 = scmp.eq.s32.totalorder %s19, 0
      %p186 = por %p184, %p185
      %p187 = scmp.ne.s32.totalorder %s179, %s181
      %p188 = scmp.eq.s32.totalorder %s24, 1
      %p189 = por %p187, %p188
      %p190 = scmp.ne.s32.totalorder %s181, %s182
      %p191 = scmp.eq.s32.totalorder %s24, 0
      %p192 = por %p190, %p191
      %p193 = scmp.ne.s32.totalorder %s181, %s182
      %p194 = scmp.eq.s32.totalorder %s25, 1
      %p195 = por %p193, %p194
      %p197 = scmp.ne.s32.totalorder %s182, %s196
      %p198 = scmp.eq.s32.totalorder %s25, 0
      %p199 = por %p197, %p198
      %s201 = sadd.s32 %s200, 1
      %p204 = scmp.eq.s32.totalorder %s19, 1
      %p205 = scmp.ne.s32.totalorder %s200, %s202
      %p206 = scmp.eq.s32.totalorder %s19, 0
      %p207 = por %p205, %p206
      %p208 = scmp.ne.s32.totalorder %s200, %s202
      %p209 = scmp.eq.s32.totalorder %s24, 1
      %p210 = por %p208, %p209
      %p211 = scmp.ne.s32.totalorder %s202, %s203
      %p212 = scmp.eq.s32.totalorder %s24, 0
      %p213 = por %p211, %p212
      %p214 = scmp.ne.s32.totalorder %s202, %s203
      %p215 = scmp.eq.s32.totalorder %s25, 1
      %p216 = por %p214, %p215
      %p218 = scmp.ne.s32.totalorder %s203, %s217
      %p219 = scmp.eq.s32.totalorder %s25, 0
      %p220 = por %p218, %p219
      %s222 = sadd.s32 %s221, 1
      %p225 = scmp.eq.s32.totalorder %s19, 1
      %p226 = scmp.ne.s32.totalorder %s221, %s223
      %p227 = scmp.eq.s32.totalorder %s19, 0
      %p228 = por %p226, %p227
      %p229 = scmp.ne.s32.totalorder %s221, %s223
      %p230 = scmp.eq.s32.totalorder %s24, 1
      %p231 = por %p229, %p230
      %p232 = scmp.ne.s32.totalorder %s223, %s224
      %p233 = scmp.eq.s32.totalorder %s24, 0
      %p234 = por %p232, %p233
      %p235 = scmp.ne.s32.totalorder %s223, %s224
      %p236 = scmp.eq.s32.totalorder %s25, 1
      %p237 = por %p235, %p236
      %p239 = scmp.ne.s32.totalorder %s224, %s238
      %p240 = scmp.eq.s32.totalorder %s25, 0
      %p241 = por %p239, %p240
      %s242 = ssub.s32 %s19, %s26
      %p243 = scmp.eq.s32.totalorder %s242, 0
      %s245 = sadd.s32 %s244, 1
      %s246 = scalar_select %p243, %s244, %s245
      %p249 = pneg %p243
      %p250 = scmp.eq.s32.totalorder %s19, 1
      %p251 = por %p249, %p250
      %p252 = scmp.ne.s32.totalorder %s244, %s247
      %p253 = scmp.eq.s32.totalorder %s19, 0
      %p254 = por %p252, %p253
      %p255 = scmp.ne.s32.totalorder %s244, %s247
      %p256 = scmp.eq.s32.totalorder %s24, 1
      %p257 = por %p255, %p256
      %p258 = scmp.ne.s32.totalorder %s247, %s248
      %p259 = scmp.eq.s32.totalorder %s24, 0
      %p260 = por %p258, %p259
      %p261 = scmp.ne.s32.totalorder %s247, %s248
      %p262 = scmp.eq.s32.totalorder %s25, 1
      %p263 = por %p261, %p262
      %p265 = scmp.ne.s32.totalorder %s248, %s264
      %p266 = scmp.eq.s32.totalorder %s25, 0
      %p267 = por %p265, %p266
      %p268 = scmp.le.s32.totalorder 1, %s19
      %p269 = scmp.lt.s32.totalorder %s19, 3
      %p270 = pnand %p268, %p269
      %p271 = pneg %p270
      // Predicated region
      $region9: #{tpu_custom_call.1} parent=5 // pred_check
        _
      $region10: #{tpu_custom_call.1} parent=5 // pred_check_branch
        %273 = sbr.rel (%p270) target = $region12
      $region11: #{tpu_custom_call.1} parent=5 // pred_region
        %s274 = ssub.s32 %s19, 1
        // Predicated region
        $region13: #{tpu_custom_call.1} parent=11 // pred_check
          %p275 = pneg %p66
        $region14: #{tpu_custom_call.1} parent=11 // pred_check_branch
          %277 = sbr.rel (%p275) target = $region16
        $region15: #{tpu_custom_call.1} parent=11 // pred_region
          _
        $region16: #{tpu_custom_call.1} parent=11 // pred_fallthru
          _
        // Predicated region
        $region17: #{tpu_custom_call.1} parent=11 // pred_check
          %p278 = pneg %p87
        $region18: #{tpu_custom_call.1} parent=11 // pred_check_branch
          %280 = sbr.rel (%p278) target = $region20
        $region19: #{tpu_custom_call.1} parent=11 // pred_region
          _
        $region20: #{tpu_custom_call.1} parent=11 // pred_fallthru
          _
        // Predicated region
        $region21: #{tpu_custom_call.1} parent=11 // pred_check
          %p281 = pneg %p108
        $region22: #{tpu_custom_call.1} parent=11 // pred_check_branch
          %283 = sbr.rel (%p281) target = $region24
        $region23: #{tpu_custom_call.1} parent=11 // pred_region
          _
        $region24: #{tpu_custom_call.1} parent=11 // pred_fallthru
          _
        // Predicated region
        $region25: #{tpu_custom_call.1} parent=11 // pred_check
          %p284 = pneg %p129
        $region26: #{tpu_custom_call.1} parent=11 // pred_check_branch
          %286 = sbr.rel (%p284) target = $region28
        $region27: #{tpu_custom_call.1} parent=11 // pred_region
          _
        $region28: #{tpu_custom_call.1} parent=11 // pred_fallthru
          _
        // Predicated region
        $region29: #{tpu_custom_call.1} parent=11 // pred_check
          %p287 = pneg %p150
        $region30: #{tpu_custom_call.1} parent=11 // pred_check_branch
          %289 = sbr.rel (%p287) target = $region32
        $region31: #{tpu_custom_call.1} parent=11 // pred_region
          _
        $region32: #{tpu_custom_call.1} parent=11 // pred_fallthru
          _
        // Predicated region
        $region33: #{tpu_custom_call.1} parent=11 // pred_check
          %p290 = pneg %p171
        $region34: #{tpu_custom_call.1} parent=11 // pred_check_branch
          %292 = sbr.rel (%p290) target = $region36
        $region35: #{tpu_custom_call.1} parent=11 // pred_region
          _
        $region36: #{tpu_custom_call.1} parent=11 // pred_fallthru
          _
        // Predicated region
        $region37: #{tpu_custom_call.1} parent=11 // pred_check
          %p293 = pneg %p192
        $region38: #{tpu_custom_call.1} parent=11 // pred_check_branch
          %295 = sbr.rel (%p293) target = $region40
        $region39: #{tpu_custom_call.1} parent=11 // pred_region
          _
        $region40: #{tpu_custom_call.1} parent=11 // pred_fallthru
          _
        // Predicated region
        $region41: #{tpu_custom_call.1} parent=11 // pred_check
          %p296 = pneg %p213
        $region42: #{tpu_custom_call.1} parent=11 // pred_check_branch
          %298 = sbr.rel (%p296) target = $region44
        $region43: #{tpu_custom_call.1} parent=11 // pred_region
          _
        $region44: #{tpu_custom_call.1} parent=11 // pred_fallthru
          _
        // Predicated region
        $region45: #{tpu_custom_call.1} parent=11 // pred_check
          %p299 = pneg %p234
        $region46: #{tpu_custom_call.1} parent=11 // pred_check_branch
          %301 = sbr.rel (%p299) target = $region48
        $region47: #{tpu_custom_call.1} parent=11 // pred_region
          _
        $region48: #{tpu_custom_call.1} parent=11 // pred_fallthru
          _
      $region12: #{tpu_custom_call.1} parent=5 // pred_fallthru
        _
      %p302 = scmp.lt.s32.totalorder %s19, 2
      // Predicated region
      $region49: #{tpu_custom_call.1} parent=5 // pred_check
        %p303 = pneg %p302
      $region50: #{tpu_custom_call.1} parent=5 // pred_check_branch
        %305 = sbr.rel (%p303) target = $region52
      $region51: #{tpu_custom_call.1} parent=5 // pred_region
        // Predicated region
        $region53: #{tpu_custom_call.1} parent=51 // pred_check
          %p306 = pneg %p39
        $region54: #{tpu_custom_call.1} parent=51 // pred_check_branch
          %308 = sbr.rel (%p306) target = $region56
        $region55: #{tpu_custom_call.1} parent=51 // pred_region
          %p309 = scmp.lt.s32.totalorder %s19, 1
          %s310 = scalar_select %p309, %s19, 1
          %s311 = smul.addr %s310, 2
          %s312 = smul.addr %s311, 4
          %s313 = scalar_lea.vmem %s0, %s312
        $region56: #{tpu_custom_call.1} parent=51 // pred_fallthru
          _
      $region52: #{tpu_custom_call.1} parent=5 // pred_fallthru
        _
      %p314 = scmp.le.s32.totalorder 1, %s19
      %p315 = scmp.lt.s32.totalorder %s19, 3
      %p316 = pnand %p314, %p315
      %p317 = pneg %p316
      // Predicated region
      $region57: #{tpu_custom_call.1} parent=5 // pred_check
        _
      $region58: #{tpu_custom_call.1} parent=5 // pred_check_branch
        %319 = sbr.rel (%p316) target = $region60
      $region59: #{tpu_custom_call.1} parent=5 // pred_region
        %s320 = ssub.s32 %s19, 1
        %p321 = scmp.lt.s32.totalorder %s24, 1
        %s322 = scalar_select %p321, %s24, 1
        %s323 = smul.addr %s322, 2
        %s324 = smul.addr %s323, 4
        %s325 = scalar_lea.vmem %s0, %s324
        %p326 = pneg %p45
        %p327 = pneg %p42
        %p328 = pneg %p66
        %p329 = pneg %p63
        %p330 = pneg %p87
        %p331 = pneg %p84
        %p332 = pneg %p108
        %p333 = pneg %p105
        %p334 = pneg %p129
        %p335 = pneg %p126
        %p336 = pneg %p150
        %p337 = pneg %p147
        %p338 = pneg %p171
        %p339 = pneg %p168
        %p340 = pneg %p192
        %p341 = pneg %p189
        %p342 = pneg %p213
        %p343 = pneg %p210
        %p344 = pneg %p234
        %p345 = pneg %p231
        %p346 = pneg %p260
        %p347 = pneg %p257
        %s348 = sand.u32 %s247, 1
        %s349 = scalar_lea.sflag [#allocation5], %s348
        %s350 = sand.u32 %s247, 1
        %s351 = smul.addr %s350, 16
        %s352 = scalar_lea.vmem [#allocation4], %s351
        %p353 = scmp.lt.s32.totalorder %s24, 1
        %s354 = scalar_select %p353, %s24, 1
        %s355 = smul.addr %s354, 2
        %s356 = smul.addr %s355, 4
        %s357 = scalar_lea.vmem %s0, %s356
        %v358 = vld [vmem:[%s1] sm:$0xf]
        %v359 = vld [vmem:[%s357] sm:$0xff]
        %v361 = vcombine.high %v359, %v359
        %363 = vrot.lane.b32.xlu0 %v359, 17
        %v364 = vpop.permute.xlu0 %363
        %365 = vrot.lane.b32.xlu0 %v361, 17
        %v366 = vpop.permute.xlu0 %365
        %v367 = vlaneseq
        %v368 = vand.u32 %v367, 127
        %vm369 = vcmp.lt.s32.totalorder %v368, 17
        %v370 = vsel %vm369, %v364, %v366
        %v371 = vsel %vm369, %v366, %v364
        %vm372 = vcmp.ge.s32.totalorder %v358, 1
        %v373 = vsel %vm372, 1, 0
        %v374 = vrot.slane %v373, 7
        %v375 = vrot.slane %v374, 2
        %vm376 = vcmp.ne.s32.totalorder %v375, 0
        %vm377 = vmand %vm372, %vm376
        %v378 = vsel %vm377, 1, 0
        %v379 = vcvt.s32.f32 %v378
        %v381 = vlaneseq
        %v382 = vshrl.u32 %v381, 7
        %v383 = vsub.s32 0, %v382
        %v384 = vrot.slane %v379, %v383
        %v385 = vlaneseq
        %v386 = vshrl.u32 %v385, 7
        %v387 = vsub.s32 2, %v386
        %v388 = vrot.slane %v379, %v387
        %v391 = vlaneseq
        %v392 = vshrl.u32 %v391, 7
        %v393 = vsub.s32 0, %v392
        %v394 = vrot.slane %v384, %v393
        %v395 = vlaneseq
        %v396 = vshrl.u32 %v395, 7
        %v397 = vsub.s32 0, %v396
        %v398 = vrot.slane %v388, %v397
        %v399 = vmul.f32 %v371, %v394
        %v400 = vmul.f32 %v370, %v398
        %401 = vst [vmem:[#allocation2] sm:$0xf] %v399
        %402 = vst [vmem:[#allocation2 + $0x8] sm:$0xf] %v400
        %403 = vrot.lane.b32.xlu0 %v359, 16
        %v404 = vpop.permute.xlu0 %403
        %405 = vrot.lane.b32.xlu0 %v361, 16
        %v406 = vpop.permute.xlu0 %405
        %vm407 = vcmp.lt.s32.totalorder %v368, 16
        %v408 = vsel %vm407, %v404, %v406
        %v409 = vsel %vm407, %v406, %v404
        %v410 = vcvt.s32.f32 %v373
        %v412 = vlaneseq
        %v413 = vshrl.u32 %v412, 7
        %v414 = vsub.s32 0, %v413
        %v415 = vrot.slane %v410, %v414
        %v416 = vlaneseq
        %v417 = vshrl.u32 %v416, 7
        %v418 = vsub.s32 2, %v417
        %v419 = vrot.slane %v410, %v418
        %v422 = vlaneseq
        %v423 = vshrl.u32 %v422, 7
        %v424 = vsub.s32 0, %v423
        %v425 = vrot.slane %v415, %v424
        %v426 = vlaneseq
        %v427 = vshrl.u32 %v426, 7
        %v428 = vsub.s32 0, %v427
        %v429 = vrot.slane %v419, %v428
        %v430 = vmul.f32 %v409, %v425
        %v431 = vmul.f32 %v408, %v429
        %v434 = vrot.slane %v430, 4
        %v435 = vrot.slane %v431, 4
        %438 = vst [vmem:[#allocation2] sm:$0xf0] %v434
        %439 = vst [vmem:[#allocation2 + $0x8] sm:$0xf0] %v435
        %440 = vrot.lane.b32.xlu0 %v359, 15
        %v441 = vpop.permute.xlu0 %440
        %442 = vrot.lane.b32.xlu0 %v361, 15
        %v443 = vpop.permute.xlu0 %442
        %vm444 = vcmp.lt.s32.totalorder %v368, 15
        %v445 = vsel %vm444, %v441, %v443
        %v446 = vsel %vm444, %v443, %v441
        %vm447 = vcmp.lt.s32.totalorder %v358, 15
        %v448 = vsel %vm447, 1, 0
        %v449 = vrot.slane %v448, 7
        %v450 = vrot.slane %v449, 2
        %vm451 = vcmp.ne.s32.totalorder %v450, 0
        %vm452 = vmand %vm372, %vm451
        %v453 = vsel %vm452, 1, 0
        %v454 = vcvt.s32.f32 %v453
        %v456 = vlaneseq
        %v457 = vshrl.u32 %v456, 7
        %v458 = vsub.s32 0, %v457
        %v459 = vrot.slane %v454, %v458
        %v460 = vlaneseq
        %v461 = vshrl.u32 %v460, 7
        %v462 = vsub.s32 2, %v461
        %v463 = vrot.slane %v454, %v462
        %v466 = vlaneseq
        %v467 = vshrl.u32 %v466, 7
        %v468 = vsub.s32 0, %v467
        %v469 = vrot.slane %v459, %v468
        %v470 = vlaneseq
        %v471 = vshrl.u32 %v470, 7
        %v472 = vsub.s32 0, %v471
        %v473 = vrot.slane %v463, %v472
        %v474 = vmul.f32 %v446, %v469
        %v475 = vmul.f32 %v445, %v473
        %476 = vst [vmem:[#allocation2 + $0x10] sm:$0xf] %v474
        %477 = vst [vmem:[#allocation2 + $0x18] sm:$0xf] %v475
        %478 = vrot.lane.b32.xlu0 %v359, 1
        %v479 = vpop.permute.xlu0 %478
        %480 = vrot.lane.b32.xlu0 %v361, 1
        %v481 = vpop.permute.xlu0 %480
        %vm482 = vcmp.lt.s32.totalorder %v368, 1
        %v483 = vsel %vm482, %v479, %v481
        %v484 = vsel %vm482, %v481, %v479
        %v485 = vlaneseq
        %v486 = vshrl.u32 %v485, 7
        %v487 = vsub.s32 1, %v486
        %v488 = vrot.slane %v410, %v487
        %v489 = vlaneseq
        %v490 = vshrl.u32 %v489, 7
        %v491 = vsub.s32 3, %v490
        %v492 = vrot.slane %v410, %v491
        %v495 = vlaneseq
        %v496 = vshrl.u32 %v495, 7
        %v497 = vsub.s32 1, %v496
        %v498 = vrot.slane %v488, %v497
        %v499 = vlaneseq
        %v500 = vshrl.u32 %v499, 7
        %v501 = vsub.s32 1, %v500
        %v502 = vrot.slane %v492, %v501
        %v503 = vmul.f32 %v484, %v498
        %v504 = vmul.f32 %v483, %v502
        %v507 = vrot.slane %v503, 4
        %v508 = vrot.slane %v504, 4
        %511 = vst [vmem:[#allocation2 + $0x10] sm:$0xf0] %v507
        %512 = vst [vmem:[#allocation2 + $0x18] sm:$0xf0] %v508
        %513 = vst [vmem:[#allocation2 + $0x20] sm:$0xf] %v359
        %514 = vst [vmem:[#allocation2 + $0x28] sm:$0xf] %v361
        %515 = vrot.lane.b32.xlu0 %v359, 127
        %v516 = vpop.permute.xlu0 %515
        %517 = vrot.lane.b32.xlu0 %v361, 127
        %v518 = vpop.permute.xlu0 %517
        %vm519 = vcmp.lt.s32.totalorder %v368, 127
        %v520 = vsel %vm519, %v516, %v518
        %v521 = vsel %vm519, %v518, %v516
        %v522 = vcvt.s32.f32 %v448
        %v524 = vlaneseq
        %v525 = vshrl.u32 %v524, 7
        %v526 = vsub.s32 1, %v525
        %v527 = vrot.slane %v522, %v526
        %v528 = vlaneseq
        %v529 = vshrl.u32 %v528, 7
        %v530 = vsub.s32 3, %v529
        %v531 = vrot.slane %v522, %v530
        %v534 = vlaneseq
        %v535 = vshrl.u32 %v534, 7
        %v536 = vsub.s32 1, %v535
        %v537 = vrot.slane %v527, %v536
        %v538 = vlaneseq
        %v539 = vshrl.u32 %v538, 7
        %v540 = vsub.s32 1, %v539
        %v541 = vrot.slane %v531, %v540
        %v542 = vmul.f32 %v520, %v537
        %v543 = vmul.f32 %v521, %v541
        %v546 = vrot.slane %v542, 4
        %v547 = vrot.slane %v543, 4
        %550 = vst [vmem:[#allocation2 + $0x20] sm:$0xf0] %v546
        %551 = vst [vmem:[#allocation2 + $0x28] sm:$0xf0] %v547
        %552 = vrot.lane.b32.xlu0 %v359, 113
        %v553 = vpop.permute.xlu0 %552
        %554 = vrot.lane.b32.xlu0 %v361, 113
        %v555 = vpop.permute.xlu0 %554
        %vm556 = vcmp.lt.s32.totalorder %v368, 113
        %v557 = vsel %vm556, %v553, %v555
        %v558 = vsel %vm556, %v555, %v553
        %vm559 = vmand %vm447, %vm376
        %v560 = vsel %vm559, 1, 0
        %v561 = vcvt.s32.f32 %v560
        %v563 = vlaneseq
        %v564 = vshrl.u32 %v563, 7
        %v565 = vsub.s32 0, %v564
        %v566 = vrot.slane %v561, %v565
        %v567 = vlaneseq
        %v568 = vshrl.u32 %v567, 7
        %v569 = vsub.s32 2, %v568
        %v570 = vrot.slane %v561, %v569
        %v573 = vlaneseq
        %v574 = vshrl.u32 %v573, 7
        %v575 = vsub.s32 0, %v574
        %v576 = vrot.slane %v566, %v575
        %v577 = vlaneseq
        %v578 = vshrl.u32 %v577, 7
        %v579 = vsub.s32 0, %v578
        %v580 = vrot.slane %v570, %v579
        %v581 = vmul.f32 %v557, %v576
        %v582 = vmul.f32 %v558, %v580
        %583 = vst [vmem:[#allocation2 + $0x30] sm:$0xf] %v581
        %584 = vst [vmem:[#allocation2 + $0x38] sm:$0xf] %v582
        %585 = vrot.lane.b32.xlu0 %v359, 112
        %v586 = vpop.permute.xlu0 %585
        %587 = vrot.lane.b32.xlu0 %v361, 112
        %v588 = vpop.permute.xlu0 %587
        %vm589 = vcmp.lt.s32.totalorder %v368, 112
        %v590 = vsel %vm589, %v586, %v588
        %v591 = vsel %vm589, %v588, %v586
        %v592 = vlaneseq
        %v593 = vshrl.u32 %v592, 7
        %v594 = vsub.s32 0, %v593
        %v595 = vrot.slane %v522, %v594
        %v596 = vlaneseq
        %v597 = vshrl.u32 %v596, 7
        %v598 = vsub.s32 2, %v597
        %v599 = vrot.slane %v522, %v598
        %v602 = vlaneseq
        %v603 = vshrl.u32 %v602, 7
        %v604 = vsub.s32 0, %v603
        %v605 = vrot.slane %v595, %v604
        %v606 = vlaneseq
        %v607 = vshrl.u32 %v606, 7
        %v608 = vsub.s32 0, %v607
        %v609 = vrot.slane %v599, %v608
        %v610 = vmul.f32 %v590, %v605
        %v611 = vmul.f32 %v591, %v609
        %v614 = vrot.slane %v610, 4
        %v615 = vrot.slane %v611, 4
        %618 = vst [vmem:[#allocation2 + $0x30] sm:$0xf0] %v614
        %619 = vst [vmem:[#allocation2 + $0x38] sm:$0xf0] %v615
        %620 = vrot.lane.b32.xlu0 %v359, 111
        %v621 = vpop.permute.xlu0 %620
        %622 = vrot.lane.b32.xlu0 %v361, 111
        %v623 = vpop.permute.xlu0 %622
        %vm624 = vcmp.lt.s32.totalorder %v368, 111
        %v625 = vsel %vm624, %v621, %v623
        %v626 = vsel %vm624, %v623, %v621
        %vm627 = vmand %vm447, %vm451
        %v628 = vsel %vm627, 1, 0
        %v629 = vcvt.s32.f32 %v628
        %v631 = vlaneseq
        %v632 = vshrl.u32 %v631, 7
        %v633 = vsub.s32 0, %v632
        %v634 = vrot.slane %v629, %v633
        %v635 = vlaneseq
        %v636 = vshrl.u32 %v635, 7
        %v637 = vsub.s32 2, %v636
        %v638 = vrot.slane %v629, %v637
        %v641 = vlaneseq
        %v642 = vshrl.u32 %v641, 7
        %v643 = vsub.s32 0, %v642
        %v644 = vrot.slane %v634, %v643
        %v645 = vlaneseq
        %v646 = vshrl.u32 %v645, 7
        %v647 = vsub.s32 0, %v646
        %v648 = vrot.slane %v638, %v647
        %v649 = vmul.f32 %v625, %v644
        %v650 = vmul.f32 %v626, %v648
        %651 = vst [vmem:[#allocation2 + $0x40] sm:$0xf] %v649
        %652 = vst [vmem:[#allocation2 + $0x48] sm:$0xf] %v650
        %v653 = vld [vmem:[#allocation2] sm:$0xff]
        %v654 = vld [vmem:[#allocation2 + $0x8] sm:$0xff]
        %v655 = vld [vmem:[#allocation2 + $0x10] sm:$0xff]
        %v656 = vld [vmem:[#allocation2 + $0x18] sm:$0xff]
        %v657 = vld [vmem:[#allocation2 + $0x20] sm:$0xff]
        %v658 = vld [vmem:[#allocation2 + $0x28] sm:$0xff]
        %v659 = vld [vmem:[#allocation2 + $0x30] sm:$0xff]
        %v660 = vld [vmem:[#allocation2 + $0x38] sm:$0xff]
        %v661 = vld [vmem:[#allocation2 + $0x40] sm:$0xf]
        %v662 = vld [vmem:[#allocation2 + $0x48] sm:$0xf]
        %v663 = vld [vmem:[%s2] sm:$0xff]
        %v664 = vld [vmem:[%s3] sm:$0xff]
        %666 = vset.pattern.permute.xlu0 0
        %667 = vperm.xlu0 %666, %v664
        %v668 = vpop.permute.xlu0 %667
        %vm670 = vcmask 293888
        %v672 = vsel %vm670, %v663, 0
        %vm674 = vcmask 1043456
        %v676 = vsel %vm674, %v661, 0
        %v679 = vsel %vm674, %v662, 0
        %681 = vmatprep.subr.mxu0 0.0
        %682 = vmatpush1.msra.mxu0 0.0
        %683 = vmatprep.subr.mxu0 0.0
        %684 = vmatpush1.msra.mxu0 0.0
        %685 = vmatprep.subr.mxu0 0.0
        %686 = vmatpush1.msra.mxu0 0.0
        %687 = vmatprep.subr.mxu0 0.0
        %688 = vmatpush1.msra.mxu0 0.0
        %689 = vmatprep.subr.mxu0 0.0
        %690 = vmatpush1.msra.mxu0 0.0
        %691 = vmatprep.subr.mxu0 0.0
        %692 = vmatpush1.msra.mxu0 0.0
        %693 = vmatprep.subr.mxu0 0.0
        %694 = vmatpush1.msra.mxu0 0.0
        %695 = vmatprep.subr.mxu0 0.0
        %696 = vmatpush1.msra.mxu0 0.0
        %697 = vmatprep.subr.mxu0 0.0
        %698 = vmatpush1.msra.mxu0 0.0
        %699 = vmatprep.subr.mxu0 0.0
        %700 = vmatpush1.msra.mxu0 0.0
        %701 = vmatprep.subr.mxu0 0.0
        %702 = vmatpush1.msra.mxu0 0.0
        %703 = vmatprep.subr.mxu0 %v679
        %704 = vmatpush1.msra.mxu0 %v676
        %705 = vmatprep.subr.mxu0 %v660
        %706 = vmatpush1.msra.mxu0 %v659
        %707 = vmatprep.subr.mxu0 %v658
        %708 = vmatpush1.msra.mxu0 %v657
        %709 = vmatprep.subr.mxu0 %v656
        %710 = vmatpush1.msra.mxu0 %v655
        %711 = vmatprep.subr.mxu0 %v654
        %712 = vmatpush1.msra.mxu0 %v653
        %713 = vmatprep.subr.mxu0 0.0
        %714 = vmatpush2.msra.mxu0 0.0
        %715 = vmatprep.subr.mxu0 0.0
        %716 = vmatpush2.msra.mxu0 0.0
        %717 = vmatprep.subr.mxu0 0.0
        %718 = vmatpush2.msra.mxu0 0.0
        %719 = vmatprep.subr.mxu0 0.0
        %720 = vmatpush2.msra.mxu0 0.0
        %721 = vmatprep.subr.mxu0 0.0
        %722 = vmatpush2.msra.mxu0 0.0
        %723 = vmatprep.subr.mxu0 0.0
        %724 = vmatpush2.msra.mxu0 0.0
        %725 = vmatprep.subr.mxu0 0.0
        %726 = vmatpush2.msra.mxu0 0.0
        %727 = vmatprep.subr.mxu0 0.0
        %728 = vmatpush2.msra.mxu0 0.0
        %729 = vmatprep.subr.mxu0 0.0
        %730 = vmatpush2.msra.mxu0 0.0
        %731 = vmatprep.subr.mxu0 0.0
        %732 = vmatpush2.msra.mxu0 0.0
        %733 = vmatprep.subr.mxu0 0.0
        %734 = vmatpush2.msra.mxu0 0.0
        %735 = vmatprep.subr.mxu0 0.0
        %736 = vmatpush2.msra.mxu0 0.0
        %737 = vmatprep.subr.mxu0 0.0
        %738 = vmatpush2.msra.mxu0 0.0
        %739 = vmatprep.subr.mxu0 0.0
        %740 = vmatpush2.msra.mxu0 0.0
        %741 = vmatprep.subr.mxu0 0.0
        %742 = vmatpush2.msra.mxu0 0.0
        %743 = vmatprep.subr.mxu0 0.0
        %744 = vmatpush2.msra.mxu0 0.0
        %745 = vmatprep.mubr.f32.mxu0 0.0
        %746 = vmatmul.mubr.f32.gmra.mxu0 %v672
        %v747 = vpop.f32.mrf.mxu0
        %v748 = vadd.f32 %v668, %v747
        %v749 = vpop.f32.mrf.mxu0
        %v750 = vadd.f32 %v668, %v749
        %751 = vdwg.mxu0
        %v752 = vld [vmem:[%s4] sm:$0xff]
        %v753 = vld [vmem:[%s5] sm:$0xff]
        %v754 = vmax.f32 %v748, 0.0
        %v755 = vmax.f32 %v750, 0.0
        %v756 = vadd.f32 %v754, %v755
        %757 = vadd.xlane.f32.xlu0 %v756
        %v758 = vpop.xlane.xlu0 %757
        %v759 = vrot.slane %v758, 4
        %v760 = vadd.f32 %v758, %v759
        %v761 = vrot.slane %v760, 2
        %v762 = vadd.f32 %v760, %v761
        %v763 = vrot.slane %v762, 1
        %v764 = vadd.f32 %v762, %v763
        %s765 = vtos %v764
        %s766 = smul.f32 %s765, 0.00048828125
        %v767 = vmul.f32 %v754, %v754
        %v768 = vmul.f32 %v755, %v755
        %v769 = vadd.f32 %v767, %v768
        %770 = vadd.xlane.f32.xlu0 %v769
        %v771 = vpop.xlane.xlu0 %770
        %v772 = vrot.slane %v771, 4
        %v773 = vadd.f32 %v771, %v772
        %v774 = vrot.slane %v773, 2
        %v775 = vadd.f32 %v773, %v774
        %v776 = vrot.slane %v775, 1
        %v777 = vadd.f32 %v775, %v776
        %s778 = vtos %v777
        %s779 = smul.f32 %s778, 0.00048828125
        %s780 = smul.f32 %s766, %s766
        %s781 = ssub.f32 %s779, %s780
        %v782 = vstv %s766
        %v783 = vsub.f32 %v754, %v782
        %v784 = vsub.f32 %v755, %v782
        %s785 = sadd.f32 %s781, 1e-05
        %v786 = vstv %s785
        %v787 = vrsqrt.pop %v786
        %s788 = vtos %v787
        %v789 = vstv %s788
        %v790 = vmul.f32 %v783, %v789
        %v791 = vmul.f32 %v784, %v789
        %793 = vset.pattern.permute.xlu0 0
        %794 = vperm.xlu0 %793, %v752
        %v795 = vpop.permute.xlu0 %794
        %v797 = vmul.f32 %v790, %v795
        %v798 = vmul.f32 %v791, %v795
        %800 = vset.pattern.permute.xlu0 0
        %801 = vperm.xlu0 %800, %v753
        %v802 = vpop.permute.xlu0 %801
        %v804 = vadd.f32 %v797, %v802
        %v805 = vadd.f32 %v798, %v802
        %806 = vrot.lane.b32.xlu0 %v804, 17
        %v807 = vpop.permute.xlu0 %806
        %808 = vrot.lane.b32.xlu0 %v805, 17
        %v809 = vpop.permute.xlu0 %808
        %v810 = vsel %vm369, %v807, %v809
        %v811 = vsel %vm369, %v809, %v807
        %v812 = vmul.f32 %v811, %v394
        %v813 = vmul.f32 %v810, %v398
        %814 = vst [vmem:[#allocation3] sm:$0xff] %v812
        %815 = vst [vmem:[#allocation3 + $0x8] sm:$0xff] %v813
        %816 = vrot.lane.b32.xlu0 %v804, 16
        %v817 = vpop.permute.xlu0 %816
        %818 = vrot.lane.b32.xlu0 %v805, 16
        %v819 = vpop.permute.xlu0 %818
        %v820 = vsel %vm407, %v817, %v819
        %v821 = vsel %vm407, %v819, %v817
        %v822 = vmul.f32 %v821, %v425
        %v823 = vmul.f32 %v820, %v429
        %824 = vst [vmem:[#allocation3 + $0x10] sm:$0xff] %v822
        %825 = vst [vmem:[#allocation3 + $0x18] sm:$0xff] %v823
        %826 = vrot.lane.b32.xlu0 %v804, 15
        %v827 = vpop.permute.xlu0 %826
        %828 = vrot.lane.b32.xlu0 %v805, 15
        %v829 = vpop.permute.xlu0 %828
        %v830 = vsel %vm444, %v827, %v829
        %v831 = vsel %vm444, %v829, %v827
        %v832 = vmul.f32 %v831, %v469
        %v833 = vmul.f32 %v830, %v473
        %834 = vst [vmem:[#allocation3 + $0x20] sm:$0xff] %v832
        %835 = vst [vmem:[#allocation3 + $0x28] sm:$0xff] %v833
        %836 = vrot.lane.b32.xlu0 %v804, 1
        %v837 = vpop.permute.xlu0 %836
        %838 = vrot.lane.b32.xlu0 %v805, 1
        %v839 = vpop.permute.xlu0 %838
        %v840 = vsel %vm482, %v837, %v839
        %v841 = vsel %vm482, %v839, %v837
        %v842 = vmul.f32 %v841, %v498
        %v843 = vmul.f32 %v840, %v502
        %844 = vst [vmem:[#allocation3 + $0x30] sm:$0xff] %v842
        %845 = vst [vmem:[#allocation3 + $0x38] sm:$0xff] %v843
        %846 = vst [vmem:[#allocation3 + $0x40] sm:$0xff] %v804
        %847 = vst [vmem:[#allocation3 + $0x48] sm:$0xff] %v805
        %848 = vrot.lane.b32.xlu0 %v804, 127
        %v849 = vpop.permute.xlu0 %848
        %850 = vrot.lane.b32.xlu0 %v805, 127
        %v851 = vpop.permute.xlu0 %850
        %v852 = vsel %vm519, %v849, %v851
        %v853 = vsel %vm519, %v851, %v849
        %v854 = vmul.f32 %v852, %v537
        %v855 = vmul.f32 %v853, %v541
        %856 = vst [vmem:[#allocation3 + $0x50] sm:$0xff] %v854
        %857 = vst [vmem:[#allocation3 + $0x58] sm:$0xff] %v855
        %858 = vrot.lane.b32.xlu0 %v804, 113
        %v859 = vpop.permute.xlu0 %858
        %860 = vrot.lane.b32.xlu0 %v805, 113
        %v861 = vpop.permute.xlu0 %860
        %v862 = vsel %vm556, %v859, %v861
        %v863 = vsel %vm556, %v861, %v859
        %v864 = vmul.f32 %v862, %v576
        %v865 = vmul.f32 %v863, %v580
        %866 = vst [vmem:[#allocation3 + $0x60] sm:$0xff] %v864
        %867 = vst [vmem:[#allocation3 + $0x68] sm:$0xff] %v865
        %868 = vrot.lane.b32.xlu0 %v804, 112
        %v869 = vpop.permute.xlu0 %868
        %870 = vrot.lane.b32.xlu0 %v805, 112
        %v871 = vpop.permute.xlu0 %870
        %v872 = vsel %vm589, %v869, %v871
        %v873 = vsel %vm589, %v871, %v869
        %v874 = vmul.f32 %v872, %v605
        %v875 = vmul.f32 %v873, %v609
        %876 = vst [vmem:[#allocation3 + $0x70] sm:$0xff] %v874
        %877 = vst [vmem:[#allocation3 + $0x78] sm:$0xff] %v875
        %878 = vrot.lane.b32.xlu0 %v804, 111
        %v879 = vpop.permute.xlu0 %878
        %880 = vrot.lane.b32.xlu0 %v805, 111
        %v881 = vpop.permute.xlu0 %880
        %v882 = vsel %vm624, %v879, %v881
        %v883 = vsel %vm624, %v881, %v879
        %v884 = vmul.f32 %v882, %v644
        %v885 = vmul.f32 %v883, %v648
        %886 = vst [vmem:[#allocation3 + $0x80] sm:$0xff] %v884
        %887 = vst [vmem:[#allocation3 + $0x88] sm:$0xff] %v885
        %v888 = vld [vmem:[#allocation3] sm:$0xff]
        %v889 = vld [vmem:[#allocation3 + $0x8] sm:$0xff]
        %v890 = vld [vmem:[#allocation3 + $0x10] sm:$0xff]
        %v891 = vld [vmem:[#allocation3 + $0x18] sm:$0xff]
        %v892 = vld [vmem:[#allocation3 + $0x20] sm:$0xff]
        %v893 = vld [vmem:[#allocation3 + $0x28] sm:$0xff]
        %v894 = vld [vmem:[#allocation3 + $0x30] sm:$0xff]
        %v895 = vld [vmem:[#allocation3 + $0x38] sm:$0xff]
        %v896 = vld [vmem:[#allocation3 + $0x40] sm:$0xff]
        %v897 = vld [vmem:[#allocation3 + $0x48] sm:$0xff]
        %v898 = vld [vmem:[#allocation3 + $0x50] sm:$0xff]
        %v899 = vld [vmem:[#allocation3 + $0x58] sm:$0xff]
        %v900 = vld [vmem:[#allocation3 + $0x60] sm:$0xff]
        %v901 = vld [vmem:[#allocation3 + $0x68] sm:$0xff]
        %v902 = vld [vmem:[#allocation3 + $0x70] sm:$0xff]
        %v903 = vld [vmem:[#allocation3 + $0x78] sm:$0xff]
        %v904 = vld [vmem:[#allocation3 + $0x80] sm:$0xff]
        %v905 = vld [vmem:[#allocation3 + $0x88] sm:$0xff]
        %v906 = vld [vmem:[%s6] sm:$0xff]
        %v907 = vld [vmem:[%s7] sm:$0xff]
        %909 = vset.pattern.permute.xlu0 0
        %910 = vperm.xlu0 %909, %v907
        %v911 = vpop.permute.xlu0 %910
        %vm913 = vcmask 588800
        %v915 = vsel %vm913, %v906, 0
        %917 = vmatprep.subr.mxu0 0.0
        %918 = vmatpush1.msra.mxu0 0.0
        %919 = vmatprep.subr.mxu0 0.0
        %920 = vmatpush1.msra.mxu0 0.0
        %921 = vmatprep.subr.mxu0 0.0
        %922 = vmatpush1.msra.mxu0 0.0
        %923 = vmatprep.subr.mxu0 0.0
        %924 = vmatpush1.msra.mxu0 0.0
        %925 = vmatprep.subr.mxu0 0.0
        %926 = vmatpush1.msra.mxu0 0.0
        %927 = vmatprep.subr.mxu0 0.0
        %928 = vmatpush1.msra.mxu0 0.0
        %929 = vmatprep.subr.mxu0 0.0
        %930 = vmatpush1.msra.mxu0 0.0
        %931 = vmatprep.subr.mxu0 %v905
        %932 = vmatpush1.msra.mxu0 %v904
        %933 = vmatprep.subr.mxu0 %v903
        %934 = vmatpush1.msra.mxu0 %v902
        %935 = vmatprep.subr.mxu0 %v901
        %936 = vmatpush1.msra.mxu0 %v900
        %937 = vmatprep.subr.mxu0 %v899
        %938 = vmatpush1.msra.mxu0 %v898
        %939 = vmatprep.subr.mxu0 %v897
        %940 = vmatpush1.msra.mxu0 %v896
        %941 = vmatprep.subr.mxu0 %v895
        %942 = vmatpush1.msra.mxu0 %v894
        %943 = vmatprep.subr.mxu0 %v893
        %944 = vmatpush1.msra.mxu0 %v892
        %945 = vmatprep.subr.mxu0 %v891
        %946 = vmatpush1.msra.mxu0 %v890
        %947 = vmatprep.subr.mxu0 %v889
        %948 = vmatpush1.msra.mxu0 %v888
        %949 = vmatprep.subr.mxu0 0.0
        %950 = vmatpush2.msra.mxu0 0.0
        %951 = vmatprep.subr.mxu0 0.0
        %952 = vmatpush2.msra.mxu0 0.0
        %953 = vmatprep.subr.mxu0 0.0
        %954 = vmatpush2.msra.mxu0 0.0
        %955 = vmatprep.subr.mxu0 0.0
        %956 = vmatpush2.msra.mxu0 0.0
        %957 = vmatprep.subr.mxu0 0.0
        %958 = vmatpush2.msra.mxu0 0.0
        %959 = vmatprep.subr.mxu0 0.0
        %960 = vmatpush2.msra.mxu0 0.0
        %961 = vmatprep.subr.mxu0 0.0
        %962 = vmatpush2.msra.mxu0 0.0
        %963 = vmatprep.subr.mxu0 0.0
        %964 = vmatpush2.msra.mxu0 0.0
        %965 = vmatprep.subr.mxu0 0.0
        %966 = vmatpush2.msra.mxu0 0.0
        %967 = vmatprep.subr.mxu0 0.0
        %968 = vmatpush2.msra.mxu0 0.0
        %969 = vmatprep.subr.mxu0 0.0
        %970 = vmatpush2.msra.mxu0 0.0
        %971 = vmatprep.subr.mxu0 0.0
        %972 = vmatpush2.msra.mxu0 0.0
        %973 = vmatprep.subr.mxu0 0.0
        %974 = vmatpush2.msra.mxu0 0.0
        %975 = vmatprep.subr.mxu0 0.0
        %976 = vmatpush2.msra.mxu0 0.0
        %977 = vmatprep.subr.mxu0 0.0
        %978 = vmatpush2.msra.mxu0 0.0
        %979 = vmatprep.subr.mxu0 0.0
        %980 = vmatpush2.msra.mxu0 0.0
        %981 = vmatprep.mubr.f32.mxu0 0.0
        %982 = vmatmul.mubr.f32.gmra.mxu0 %v915
        %v983 = vpop.f32.mrf.mxu0
        %v984 = vadd.f32 %v911, %v983
        %v985 = vpop.f32.mrf.mxu0
        %v986 = vadd.f32 %v911, %v985
        %987 = vdwg.mxu0
        %v988 = vld [vmem:[%s8] sm:$0xff]
        %v989 = vld [vmem:[%s9] sm:$0xff]
        %v990 = vmax.f32 %v984, 0.0
        %v991 = vmax.f32 %v986, 0.0
        %v992 = vadd.f32 %v990, %v991
        %993 = vadd.xlane.f32.xlu0 %v992
        %v994 = vpop.xlane.xlu0 %993
        %v995 = vrot.slane %v994, 4
        %v996 = vadd.f32 %v994, %v995
        %v997 = vrot.slane %v996, 2
        %v998 = vadd.f32 %v996, %v997
        %v999 = vrot.slane %v998, 1
        %v1000 = vadd.f32 %v998, %v999
        %s1001 = vtos %v1000
        %s1002 = smul.f32 %s1001, 0.00048828125
        %v1003 = vmul.f32 %v990, %v990
        %v1004 = vmul.f32 %v991, %v991
        %v1005 = vadd.f32 %v1003, %v1004
        %1006 = vadd.xlane.f32.xlu0 %v1005
        %v1007 = vpop.xlane.xlu0 %1006
        %v1008 = vrot.slane %v1007, 4
        %v1009 = vadd.f32 %v1007, %v1008
        %v1010 = vrot.slane %v1009, 2
        %v1011 = vadd.f32 %v1009, %v1010
        %v1012 = vrot.slane %v1011, 1
        %v1013 = vadd.f32 %v1011, %v1012
        %s1014 = vtos %v1013
        %s1015 = smul.f32 %s1014, 0.00048828125
        %s1016 = smul.f32 %s1002, %s1002
        %s1017 = ssub.f32 %s1015, %s1016
        %v1018 = vstv %s1002
        %v1019 = vsub.f32 %v990, %v1018
        %v1020 = vsub.f32 %v991, %v1018
        %s1021 = sadd.f32 %s1017, 1e-05
        %v1022 = vstv %s1021
        %v1023 = vrsqrt.pop %v1022
        %s1024 = vtos %v1023
        %v1025 = vstv %s1024
        %v1026 = vmul.f32 %v1019, %v1025
        %v1027 = vmul.f32 %v1020, %v1025
        %1029 = vset.pattern.permute.xlu0 0
        %1030 = vperm.xlu0 %1029, %v988
        %v1031 = vpop.permute.xlu0 %1030
        %v1033 = vmul.f32 %v1026, %v1031
        %v1034 = vmul.f32 %v1027, %v1031
        %1036 = vset.pattern.permute.xlu0 0
        %1037 = vperm.xlu0 %1036, %v989
        %v1038 = vpop.permute.xlu0 %1037
        %v1040 = vadd.f32 %v1033, %v1038
        %v1041 = vadd.f32 %v1034, %v1038
        %1042 = vst [vmem:[%s352] sm:$0xff] %v1040
        %1043 = vst [vmem:[%s352 + $0x8] sm:$0xff] %v1041
        %s1044 = sand.u32 %s247, 1
        %s1045 = scalar_lea.sflag [#allocation5], %s1044
        %s1046 = sand.u32 %s247, 1
        %s1047 = smul.addr %s1046, 16
        %s1048 = scalar_lea.vmem [#allocation4], %s1047
        // Predicated region
        $region61: #{tpu_custom_call.1} parent=59 // pred_check
          %p1049 = pneg %p257
        $region62: #{tpu_custom_call.1} parent=59 // pred_check_branch
          %1051 = sbr.rel (%p1049) target = $region64
        $region63: #{tpu_custom_call.1} parent=59 // pred_region
          %s1053 = ssub.s32 256, 256
          %1054 = vsyncadd %s1045, %s1053
          %s1055 = smul.addr %s24, 2
          %s1056 = smul.addr %s1055, 128
          %s1057 = scalar_lea.hbm %s10, %s1056
          %s1059 = sshll.u32 %s1048, 4
          %s1060 = int_to_ptr.vmem [resolvable:$true] %s1059
          %1062 = dma.vmem_to_hbm [thread:$0]  %s1060, 256, %s1057, %s1045
        $region64: #{tpu_custom_call.1} parent=59 // pred_fallthru
          _
      $region60: #{tpu_custom_call.1} parent=5 // pred_fallthru
        _
      %p1063 = scmp.le.s32.totalorder 2, %s19
      // Predicated region
      $region65: #{tpu_custom_call.1} parent=5 // pred_check
        %p1064 = pneg %p1063
      $region66: #{tpu_custom_call.1} parent=5 // pred_check_branch
        %1066 = sbr.rel (%p1064) target = $region68
      $region67: #{tpu_custom_call.1} parent=5 // pred_region
        %s1067 = ssub.s32 %s19, 2
        // Predicated region
        $region69: #{tpu_custom_call.1} parent=67 // pred_check
          %p1068 = pneg %p263
        $region70: #{tpu_custom_call.1} parent=67 // pred_check_branch
          %1070 = sbr.rel (%p1068) target = $region72
        $region71: #{tpu_custom_call.1} parent=67 // pred_region
          %s1071 = sand.u32 %s248, 1
          %s1072 = scalar_lea.sflag [#allocation5], %s1071
          %s1073 = sand.u32 %s248, 1
          %s1074 = smul.addr %s1073, 16
          %s1075 = scalar_lea.vmem [#allocation4], %s1074
          %1076 = dma.done %s1072, 256
        $region72: #{tpu_custom_call.1} parent=67 // pred_fallthru
          _
      $region68: #{tpu_custom_call.1} parent=5 // pred_fallthru
        _
    $region6: #{tpu_custom_call.1} parent=1 // loop_footer
      %s23 = sadd.s32 1, %s19
    $region7: #{tpu_custom_call.1} parent=1 // loop_footer_branch
      %18 = sbr.rel target = $region3
    $region8: #{tpu_custom_call.1} parent=1 // loop_exit
      _
    %1077 = vsyncpa [#allocation5], 1
    %s1078 = scalar_lea.sflag [#allocation5], 1
    %1079 = vsyncpa %s1078, 1

</llo_original>
